<compile_context>
chip_gen: v6e
topology: v6e:2x2x1
jax: 0.10.0
libtpu: 0.0.40
codegen_flags: <defaults>
</compile_context>

<pallas_src>
import math

import jax
import jax.numpy as jnp
from jax import lax
from jax.experimental import pallas as pl
from jax.experimental.pallas import tpu as pltpu

D_MODEL = 128
MULT = 4          # ET_ffd mult
SCALE_EPS = 1e-4  # ScaleNorm eps


def _gelu_tanh(x):
    # tanh-approx GELU (EUP-friendly); matches erf-GELU to ~1e-3 abs.
    c = math.sqrt(2.0 / math.pi)
    return 0.5 * x * (1.0 + jnp.tanh(c * (x + 0.044715 * x * x * x)))


def _sigmoid_tanh(x):
    # sigmoid(x) == 0.5*(1 + tanh(x/2)); keeps the transcendental on the EUP slot.
    return 0.5 * (jnp.tanh(0.5 * x) + 1.0)


def transformer_block_kernel(
    x_ref,     # [TM, D]   bf16  token rows of src
    wx_ref,    # [D, 4D]   bf16  fused x-side weights: [GEGLU W | nBRC Wa | nBRC Wc]
    bx_ref,    # [1, 2D]   f32   GEGLU bias only (Wa/Wc biases folded into by host-side)
    c1w_ref,   # [MULT, D] f32   grouped conv1 weight, c1w[j, c] = w1[c*MULT + j]
    c1b_ref,   # [MULT, D] f32   grouped conv1 bias
    c2w_ref,   # [MULT, D] f32   grouped conv2 weight, c2w[j, c] = w2[c, j]
    c2b_ref,   # [1, D]    f32   grouped conv2 bias
    wy_ref,    # [D, 3D]   bf16  fused y-side nBRC weights: [Ua | Uc | U]
    by_ref,    # [1, 3D]   f32   fused y-side biases: [b_Ua + b_Wa | b_Uc + b_Wc | b_U]
    z0_ref,    # [1, D]    f32   zero_0
    z1_ref,    # [1, D]    f32   zero_1
    g_ref,     # [1]       f32   ScaleNorm g (SMEM scalar)
    o_ref,     # [TM, D]   bf16
):
    x_bf = x_ref[...]                           # bf16 rows, fed straight to the MXU
    x = x_bf.astype(jnp.float32)                # single upcast for the elementwise path
    d = x.shape[1]

    # ---- fused x-side matmul: GEGLU proj (2D) + nBRC Wa/Wc (D+D) -> [TM, 4D] ----
    tx = jnp.dot(x_bf, wx_ref[...], preferred_element_type=jnp.float32)
    # Bind the Wa/Wc halves now; the GEGLU half dies before the y-side matmul,
    # shrinking the VMEM-resident live set.
    tx_a = tx[:, 2 * d:3 * d]
    tx_c = tx[:, 3 * d:]

    # ---------------- ET_ffd ----------------
    # GEGLU: a_part * gelu(gate). Bias added only to the GEGLU half.
    # TODO(synk): GLU(dim_in, layers) preprocessing omitted (definition not provided).
    txg = tx[:, :2 * d] + bx_ref[...]
    u = txg[:, :d] * _gelu_tanh(txg[:, d:])                    # [TM, D]

    # Grouped Conv1d(D, D*MULT, k=1, groups=D) + ReLU, then
    # Conv1d(D*MULT, D, k=1, groups=D) + ReLU -- per-channel, per-token math.
    c1w = c1w_ref[...]
    c1b = c1b_ref[...]
    c2w = c2w_ref[...]
    acc = jnp.zeros_like(u)
    for j in range(MULT):
        hj = jnp.maximum(u * c1w[j:j + 1, :] + c1b[j:j + 1, :], 0.0)
        acc = acc + hj * c2w[j:j + 1, :]
    ffd = jnp.maximum(acc + c2b_ref[...], 0.0)                 # [TM, D]

    # ---------------- GRUGating (nBRC), y = ffd, h = src rows ----------------
    # dropout1 is identity (eval).
    # TODO(synk): Mogrifier step omitted (definition not provided).
    ty = jnp.dot(ffd.astype(jnp.bfloat16), wy_ref[...],
                 preferred_element_type=jnp.float32) + by_ref[...]
    a_g = 1.0 + jnp.tanh(ty[:, :d] + tx_a)
    c_g = _sigmoid_tanh(ty[:, d:2 * d] + tx_c)
    inner = jnp.tanh(ty[:, 2 * d:] + a_g * x)
    gated = inner + c_g * (x - inner)                          # == c*x + (1-c)*inner

    # TODO(synk): fno / attn / mlp GRUGating stages omitted (FNO1d, conformer,
    #             Attention/ET_Encoder_Block, gMLPGPT definitions not provided).

    # ---------------- final ScaleNorm ----------------
    z = gated * z0_ref[...] + x * z1_ref[...]
    ss = jnp.sum(z * z, axis=-1, keepdims=True)
    # z / clamp(rms(z), eps)  ==  z * min(rsqrt(mean(z^2)), 1/eps)   (rsqrt -> EUP)
    inv_norm = jnp.minimum(lax.rsqrt(ss * (1.0 / d)), 1.0 / SCALE_EPS)
    o_ref[...] = (z * (inv_norm * g_ref[0])).astype(o_ref.dtype)


def transformer_block(src, params, *, tm=512, out_dtype=jnp.bfloat16):
    """src: [B, S, D] float32 (cast to bf16 internally). Returns [B, S, D] out_dtype.

    tm guidance: multiples of 256 (512-1024) on v6e/v7x, 256 on v5e; for large N
    the clamp below keeps >=16 grid steps so the 'parallel' axis splits across
    v7x's two TensorCores. tm must be a multiple of 16 (bf16 sublane packing) and
    divide N = B*S.
    """
    B, S, D = src.shape
    assert D == D_MODEL
    N = B * S
    x2d = src.reshape(N, D).astype(jnp.bfloat16)   # bf16 token slab: halves HBM traffic

    tm = min(tm, N)
    if N >= 16 * 256:
        # keep >= 16 grid steps (v7x dual-TC) and a multiple of 256 (v6e/v7x MXU M-fill)
        tm = min(tm, max(256, (N // 16) // 256 * 256))
    while tm > 16 and N % tm != 0:
        tm -= 16
    assert N % tm == 0 and tm % 16 == 0, (N, tm)

    full = lambda *dims: pl.BlockSpec(dims, lambda i: (0,) * len(dims))

    cost = pl.CostEstimate(
        flops=2 * N * D * (7 * D),                 # [N,D]@[D,4D] + [N,D]@[D,3D]
        transcendentals=5 * N * D,                 # gelu + 3 tanh/sigmoid + rsqrt
        bytes_accessed=(2 * N * D * 2              # bf16 token in + out
                        + 7 * D * D * 2            # bf16 fused weights
                        + (5 * D + 4 * MULT * D + 2 * D + 1) * 4),  # f32 biases/convs
    )

    out = pl.pallas_call(
        transformer_block_kernel,
        out_shape=jax.ShapeDtypeStruct((N, D), out_dtype),
        grid_spec=pltpu.PrefetchScalarGridSpec(
            num_scalar_prefetch=0,
            grid=(N // tm,),
            in_specs=[
                pl.BlockSpec((tm, D), lambda i: (i, 0)),            # x rows (bf16)
                full(D, 4 * D),                                     # fused x-side W (bf16)
                full(1, 2 * D),                                     # GEGLU bias
                full(MULT, D),                                      # conv1 W
                full(MULT, D),                                      # conv1 b
                full(MULT, D),                                      # conv2 W
                full(1, D),                                         # conv2 b
                full(D, 3 * D),                                     # fused y-side W (bf16)
                full(1, 3 * D),                                     # fused y-side bias
                full(1, D),                                         # zero_0
                full(1, D),                                         # zero_1
                pl.BlockSpec(memory_space=pltpu.MemorySpace.SMEM),  # scalenorm g (scalar)
            ],
            out_specs=pl.BlockSpec((tm, D), lambda i: (i, 0)),
        ),
        compiler_params=pltpu.CompilerParams(
            dimension_semantics=("parallel",),
            vmem_limit_bytes=32 * 1024 * 1024),
        cost_estimate=cost,
    )(
        x2d,
        params["wx"], params["bx"],
        params["conv1_w"], params["conv1_b"], params["conv2_w"], params["conv2_b"],
        params["wy"], params["by"],
        params["zero_0"], params["zero_1"], params["g"],
    )
    return out.reshape(B, S, D)


def init_params(key, d=D_MODEL, mult=MULT):
    """Random params in the fused kernel layout (weights stored as (in, out))."""
    ks = jax.random.split(key, 16)
    s = 0.05
    f32 = jnp.float32
    # raw per-submodule weights
    geglu_w = jax.random.normal(ks[0], (d, 2 * d), f32) * s     # GEGLU Linear(d, 2d)
    geglu_b = jax.random.normal(ks[1], (2 * d,), f32) * s
    conv1_w = jax.random.normal(ks[2], (mult, d), f32) * s      # Conv1d(d, d*mult, 1, groups=d)
    conv1_b = jax.random.normal(ks[3], (mult, d), f32) * s
    conv2_w = jax.random.normal(ks[4], (mult, d), f32) * s      # Conv1d(d*mult, d, 1, groups=d)
    conv2_b = jax.random.normal(ks[5], (d,), f32) * s
    ua, wa, uc, wc, uu = (jax.random.normal(ks[6 + i], (d, d), f32) * s for i in range(5))
    b_ua, b_wa, b_uc, b_wc, b_u = (
        jax.random.normal(ks[11 + i], (d,), f32) * s for i in range(5))
    return {
        # fused x-side: one [d, 4d] matmul covers GEGLU proj + nBRC Wa/Wc (no bias)
        "wx": jnp.concatenate([geglu_w, wa, wc], axis=1).astype(jnp.bfloat16),
        "bx": geglu_b.reshape(1, 2 * d),
        "conv1_w": conv1_w, "conv1_b": conv1_b,
        "conv2_w": conv2_w, "conv2_b": conv2_b.reshape(1, d),
        # fused y-side: one [d, 3d] matmul covers nBRC Ua/Uc/U; the paired Wa/Wc
        # biases are pre-combined into the Ua/Uc bias rows host-side.
        "wy": jnp.concatenate([ua, uc, uu], axis=1).astype(jnp.bfloat16),
        "by": jnp.concatenate([b_ua + b_wa, b_uc + b_wc, b_u]).reshape(1, 3 * d),
        # TransformerBlock parameters
        "zero_0": jnp.ones((1, d), f32),
        "zero_1": jnp.ones((1, d), f32),
        "g": jnp.ones((1,), f32),
    }


def reference(src, params):
    """Pure-JAX reference of the same math (same bf16 token/matmul precision)."""
    B, S, D = src.shape
    x_bf = src.reshape(B * S, D).astype(jnp.bfloat16)
    x = x_bf.astype(jnp.float32)
    tx = jnp.dot(x_bf, params["wx"], preferred_element_type=jnp.float32)
    txg = tx[:, :2 * D] + params["bx"]
    u = txg[:, :D] * _gelu_tanh(txg[:, D:])
    acc = jnp.zeros_like(u)
    for j in range(MULT):
        hj = jnp.maximum(u * params["conv1_w"][j] + params["conv1_b"][j], 0.0)
        acc = acc + hj * params["conv2_w"][j]
    ffd = jnp.maximum(acc + params["conv2_b"], 0.0)
    ty = jnp.dot(ffd.astype(jnp.bfloat16), params["wy"],
                 preferred_element_type=jnp.float32) + params["by"]
    a_g = 1.0 + jnp.tanh(ty[:, :D] + tx[:, 2 * D:3 * D])
    c_g = _sigmoid_tanh(ty[:, D:2 * D] + tx[:, 3 * D:])
    inner = jnp.tanh(ty[:, 2 * D:] + a_g * x)
    gated = c_g * x + (1.0 - c_g) * inner
    z = gated * params["zero_0"] + x * params["zero_1"]
    norm = jnp.maximum(
        jnp.linalg.norm(z, axis=-1, keepdims=True) * (float(D) ** -0.5), SCALE_EPS)
    return (z / norm * params["g"][0]).reshape(B, S, D)


if __name__ == "__main__":
    key = jax.random.PRNGKey(0)
    kx, kp = jax.random.split(key)
    B, S, D = 2, 64, D_MODEL
    src = jax.random.normal(kx, (B, S, D), jnp.float32)
    params = init_params(kp)

    out = jax.block_until_ready(transformer_block(src, params))
    ref = jax.block_until_ready(reference(src, params))

    assert out.shape == (B, S, D)
    out_f32 = out.astype(jnp.float32)
    # bf16 output rounding -> use a mixed rel/abs check.
    err = float(jnp.max(jnp.abs(out_f32 - ref) / (1.0 + jnp.abs(ref))))
    assert err < 1e-2, f"mismatch vs JAX reference: {err}"
    print("KERNEL_OK")
</pallas_src>

<mosaic_0001>
module attributes {stable_mosaic.version = 11 : i64} {
  func.func @transformer_block_kernel(%arg0: i32, %arg1: memref<128x128xbf16, #tpu.memory_space<vmem>>, %arg2: memref<128x512xbf16, #tpu.memory_space<vmem>>, %arg3: memref<1x256xf32, #tpu.memory_space<vmem>>, %arg4: memref<4x128xf32, #tpu.memory_space<vmem>>, %arg5: memref<4x128xf32, #tpu.memory_space<vmem>>, %arg6: memref<4x128xf32, #tpu.memory_space<vmem>>, %arg7: memref<1x128xf32, #tpu.memory_space<vmem>>, %arg8: memref<128x384xbf16, #tpu.memory_space<vmem>>, %arg9: memref<1x384xf32, #tpu.memory_space<vmem>>, %arg10: memref<1x128xf32, #tpu.memory_space<vmem>>, %arg11: memref<1x128xf32, #tpu.memory_space<vmem>>, %arg12: memref<1xf32, #tpu.memory_space<smem>>, %arg13: memref<128x128xbf16, #tpu.memory_space<vmem>>) attributes {dimension_semantics = [#tpu.dimension_semantics<parallel>], iteration_bounds = array<i64: 1>, scalar_prefetch = 0 : i64, scratch_operands = 0 : i64, tpu.core_type = #tpu.core_type<tc>, window_params = [{transform_indices = @transform_0, window_bounds = array<i64: 128, 128>}, {pipeline_mode = #tpu.pipeline_mode<synchronous>, transform_indices = @transform_1, window_bounds = array<i64: 128, 512>}, {pipeline_mode = #tpu.pipeline_mode<synchronous>, transform_indices = @transform_2, window_bounds = array<i64: 1, 256>}, {pipeline_mode = #tpu.pipeline_mode<synchronous>, transform_indices = @transform_3, window_bounds = array<i64: 4, 128>}, {pipeline_mode = #tpu.pipeline_mode<synchronous>, transform_indices = @transform_4, window_bounds = array<i64: 4, 128>}, {pipeline_mode = #tpu.pipeline_mode<synchronous>, transform_indices = @transform_5, window_bounds = array<i64: 4, 128>}, {pipeline_mode = #tpu.pipeline_mode<synchronous>, transform_indices = @transform_6, window_bounds = array<i64: 1, 128>}, {pipeline_mode = #tpu.pipeline_mode<synchronous>, transform_indices = @transform_7, window_bounds = array<i64: 128, 384>}, {pipeline_mode = #tpu.pipeline_mode<synchronous>, transform_indices = @transform_8, window_bounds = array<i64: 1, 384>}, {pipeline_mode = #tpu.pipeline_mode<synchronous>, transform_indices = @transform_9, window_bounds = array<i64: 1, 128>}, {pipeline_mode = #tpu.pipeline_mode<synchronous>, transform_indices = @transform_10, window_bounds = array<i64: 1, 128>}, {transform_indices = @transform_11, window_bounds = array<i64: 1>}, {transform_indices = @transform_12, window_bounds = array<i64: 128, 128>}]} {
    %c0 = arith.constant 0 : index
    %c0_0 = arith.constant 0 : index
    %0 = vector.load %arg1[%c0, %c0_0] : memref<128x128xbf16, #tpu.memory_space<vmem>>, vector<128x128xbf16>
    %1 = arith.extf %0 : vector<128x128xbf16> to vector<128x128xf32>
    %c0_1 = arith.constant 0 : index
    %c0_2 = arith.constant 0 : index
    %2 = vector.load %arg2[%c0_1, %c0_2] : memref<128x512xbf16, #tpu.memory_space<vmem>>, vector<128x512xbf16>
    %cst = arith.constant dense<0.000000e+00> : vector<128x512xf32>
    %3 = tpu.matmul %0, %2, %cst {dimension_numbers = #tpu.dot_dimension_numbers<[1], [0], [0], [1], [0, 0, 1, 1], [], []>} : vector<128x128xbf16>, vector<128x512xbf16>, vector<128x512xf32> -> vector<128x512xf32>
    %4 = vector.extract_strided_slice %3 {offsets = [0, 256], sizes = [128, 128], strides = [1, 1]} : vector<128x512xf32> to vector<128x128xf32>
    %5 = vector.extract_strided_slice %3 {offsets = [0, 384], sizes = [128, 128], strides = [1, 1]} : vector<128x512xf32> to vector<128x128xf32>
    %6 = vector.extract_strided_slice %3 {offsets = [0, 0], sizes = [128, 256], strides = [1, 1]} : vector<128x512xf32> to vector<128x256xf32>
    %c0_3 = arith.constant 0 : index
    %c0_4 = arith.constant 0 : index
    %7 = vector.load %arg3[%c0_3, %c0_4] : memref<1x256xf32, #tpu.memory_space<vmem>>, vector<1x256xf32>
    %8 = vector.broadcast %7 : vector<1x256xf32> to vector<128x256xf32>
    %9 = arith.addf %6, %8 : vector<128x256xf32>
    %10 = vector.extract_strided_slice %9 {offsets = [0, 0], sizes = [128, 128], strides = [1, 1]} : vector<128x256xf32> to vector<128x128xf32>
    %11 = vector.extract_strided_slice %9 {offsets = [0, 128], sizes = [128, 128], strides = [1, 1]} : vector<128x256xf32> to vector<128x128xf32>
    %cst_5 = arith.constant 5.000000e-01 : f32
    %12 = vector.broadcast %cst_5 : f32 to vector<128x128xf32>
    %13 = arith.mulf %12, %11 : vector<128x128xf32>
    %cst_6 = arith.constant 4.471500e-02 : f32
    %14 = vector.broadcast %cst_6 : f32 to vector<128x128xf32>
    %15 = arith.mulf %14, %11 : vector<128x128xf32>
    %16 = arith.mulf %15, %11 : vector<128x128xf32>
    %17 = arith.mulf %16, %11 : vector<128x128xf32>
    %18 = arith.addf %11, %17 : vector<128x128xf32>
    %cst_7 = arith.constant 0.797884583 : f32
    %19 = vector.broadcast %cst_7 : f32 to vector<128x128xf32>
    %20 = arith.mulf %19, %18 : vector<128x128xf32>
    %21 = math.tanh %20 : vector<128x128xf32>
    %cst_8 = arith.constant 1.000000e+00 : f32
    %22 = vector.broadcast %cst_8 : f32 to vector<128x128xf32>
    %23 = arith.addf %22, %21 : vector<128x128xf32>
    %24 = arith.mulf %13, %23 : vector<128x128xf32>
    %25 = arith.mulf %10, %24 : vector<128x128xf32>
    %c0_9 = arith.constant 0 : index
    %c0_10 = arith.constant 0 : index
    %26 = vector.load %arg4[%c0_9, %c0_10] : memref<4x128xf32, #tpu.memory_space<vmem>>, vector<4x128xf32>
    %c0_11 = arith.constant 0 : index
    %c0_12 = arith.constant 0 : index
    %27 = vector.load %arg5[%c0_11, %c0_12] : memref<4x128xf32, #tpu.memory_space<vmem>>, vector<4x128xf32>
    %c0_13 = arith.constant 0 : index
    %c0_14 = arith.constant 0 : index
    %28 = vector.load %arg6[%c0_13, %c0_14] : memref<4x128xf32, #tpu.memory_space<vmem>>, vector<4x128xf32>
    %cst_15 = arith.constant 0.000000e+00 : f32
    %29 = vector.broadcast %cst_15 : f32 to vector<128x128xf32>
    %30 = vector.extract_strided_slice %26 {offsets = [0, 0], sizes = [1, 128], strides = [1, 1]} : vector<4x128xf32> to vector<1x128xf32>
    %31 = vector.broadcast %30 : vector<1x128xf32> to vector<128x128xf32>
    %32 = arith.mulf %25, %31 : vector<128x128xf32>
    %33 = vector.extract_strided_slice %27 {offsets = [0, 0], sizes = [1, 128], strides = [1, 1]} : vector<4x128xf32> to vector<1x128xf32>
    %34 = vector.broadcast %33 : vector<1x128xf32> to vector<128x128xf32>
    %35 = arith.addf %32, %34 : vector<128x128xf32>
    %cst_16 = arith.constant 0.000000e+00 : f32
    %36 = vector.broadcast %cst_16 : f32 to vector<128x128xf32>
    %37 = arith.maximumf %35, %36 : vector<128x128xf32>
    %38 = vector.extract_strided_slice %28 {offsets = [0, 0], sizes = [1, 128], strides = [1, 1]} : vector<4x128xf32> to vector<1x128xf32>
    %39 = vector.broadcast %38 : vector<1x128xf32> to vector<128x128xf32>
    %40 = arith.mulf %37, %39 : vector<128x128xf32>
    %41 = arith.addf %29, %40 : vector<128x128xf32>
    %42 = vector.extract_strided_slice %26 {offsets = [1, 0], sizes = [1, 128], strides = [1, 1]} : vector<4x128xf32> to vector<1x128xf32>
    %43 = vector.broadcast %42 : vector<1x128xf32> to vector<128x128xf32>
    %44 = arith.mulf %25, %43 : vector<128x128xf32>
    %45 = vector.extract_strided_slice %27 {offsets = [1, 0], sizes = [1, 128], strides = [1, 1]} : vector<4x128xf32> to vector<1x128xf32>
    %46 = vector.broadcast %45 : vector<1x128xf32> to vector<128x128xf32>
    %47 = arith.addf %44, %46 : vector<128x128xf32>
    %cst_17 = arith.constant 0.000000e+00 : f32
    %48 = vector.broadcast %cst_17 : f32 to vector<128x128xf32>
    %49 = arith.maximumf %47, %48 : vector<128x128xf32>
    %50 = vector.extract_strided_slice %28 {offsets = [1, 0], sizes = [1, 128], strides = [1, 1]} : vector<4x128xf32> to vector<1x128xf32>
    %51 = vector.broadcast %50 : vector<1x128xf32> to vector<128x128xf32>
    %52 = arith.mulf %49, %51 : vector<128x128xf32>
    %53 = arith.addf %41, %52 : vector<128x128xf32>
    %54 = vector.extract_strided_slice %26 {offsets = [2, 0], sizes = [1, 128], strides = [1, 1]} : vector<4x128xf32> to vector<1x128xf32>
    %55 = vector.broadcast %54 : vector<1x128xf32> to vector<128x128xf32>
    %56 = arith.mulf %25, %55 : vector<128x128xf32>
    %57 = vector.extract_strided_slice %27 {offsets = [2, 0], sizes = [1, 128], strides = [1, 1]} : vector<4x128xf32> to vector<1x128xf32>
    %58 = vector.broadcast %57 : vector<1x128xf32> to vector<128x128xf32>
    %59 = arith.addf %56, %58 : vector<128x128xf32>
    %cst_18 = arith.constant 0.000000e+00 : f32
    %60 = vector.broadcast %cst_18 : f32 to vector<128x128xf32>
    %61 = arith.maximumf %59, %60 : vector<128x128xf32>
    %62 = vector.extract_strided_slice %28 {offsets = [2, 0], sizes = [1, 128], strides = [1, 1]} : vector<4x128xf32> to vector<1x128xf32>
    %63 = vector.broadcast %62 : vector<1x128xf32> to vector<128x128xf32>
    %64 = arith.mulf %61, %63 : vector<128x128xf32>
    %65 = arith.addf %53, %64 : vector<128x128xf32>
    %66 = vector.extract_strided_slice %26 {offsets = [3, 0], sizes = [1, 128], strides = [1, 1]} : vector<4x128xf32> to vector<1x128xf32>
    %67 = vector.broadcast %66 : vector<1x128xf32> to vector<128x128xf32>
    %68 = arith.mulf %25, %67 : vector<128x128xf32>
    %69 = vector.extract_strided_slice %27 {offsets = [3, 0], sizes = [1, 128], strides = [1, 1]} : vector<4x128xf32> to vector<1x128xf32>
    %70 = vector.broadcast %69 : vector<1x128xf32> to vector<128x128xf32>
    %71 = arith.addf %68, %70 : vector<128x128xf32>
    %cst_19 = arith.constant 0.000000e+00 : f32
    %72 = vector.broadcast %cst_19 : f32 to vector<128x128xf32>
    %73 = arith.maximumf %71, %72 : vector<128x128xf32>
    %74 = vector.extract_strided_slice %28 {offsets = [3, 0], sizes = [1, 128], strides = [1, 1]} : vector<4x128xf32> to vector<1x128xf32>
    %75 = vector.broadcast %74 : vector<1x128xf32> to vector<128x128xf32>
    %76 = arith.mulf %73, %75 : vector<128x128xf32>
    %77 = arith.addf %65, %76 : vector<128x128xf32>
    %c0_20 = arith.constant 0 : index
    %c0_21 = arith.constant 0 : index
    %78 = vector.load %arg7[%c0_20, %c0_21] : memref<1x128xf32, #tpu.memory_space<vmem>>, vector<1x128xf32>
    %79 = vector.broadcast %78 : vector<1x128xf32> to vector<128x128xf32>
    %80 = arith.addf %77, %79 : vector<128x128xf32>
    %cst_22 = arith.constant 0.000000e+00 : f32
    %81 = vector.broadcast %cst_22 : f32 to vector<128x128xf32>
    %82 = arith.maximumf %80, %81 : vector<128x128xf32>
    %83 = arith.truncf %82 : vector<128x128xf32> to vector<128x128xbf16>
    %c0_23 = arith.constant 0 : index
    %c0_24 = arith.constant 0 : index
    %84 = vector.load %arg8[%c0_23, %c0_24] : memref<128x384xbf16, #tpu.memory_space<vmem>>, vector<128x384xbf16>
    %cst_25 = arith.constant dense<0.000000e+00> : vector<128x384xf32>
    %85 = tpu.matmul %83, %84, %cst_25 {dimension_numbers = #tpu.dot_dimension_numbers<[1], [0], [0], [1], [0, 0, 1, 1], [], []>} : vector<128x128xbf16>, vector<128x384xbf16>, vector<128x384xf32> -> vector<128x384xf32>
    %c0_26 = arith.constant 0 : index
    %c0_27 = arith.constant 0 : index
    %86 = vector.load %arg9[%c0_26, %c0_27] : memref<1x384xf32, #tpu.memory_space<vmem>>, vector<1x384xf32>
    %87 = vector.broadcast %86 : vector<1x384xf32> to vector<128x384xf32>
    %88 = arith.addf %85, %87 : vector<128x384xf32>
    %89 = vector.extract_strided_slice %88 {offsets = [0, 0], sizes = [128, 128], strides = [1, 1]} : vector<128x384xf32> to vector<128x128xf32>
    %90 = arith.addf %89, %4 : vector<128x128xf32>
    %91 = math.tanh %90 : vector<128x128xf32>
    %cst_28 = arith.constant 1.000000e+00 : f32
    %92 = vector.broadcast %cst_28 : f32 to vector<128x128xf32>
    %93 = arith.addf %92, %91 : vector<128x128xf32>
    %94 = vector.extract_strided_slice %88 {offsets = [0, 128], sizes = [128, 128], strides = [1, 1]} : vector<128x384xf32> to vector<128x128xf32>
    %95 = arith.addf %94, %5 : vector<128x128xf32>
    %cst_29 = arith.constant 5.000000e-01 : f32
    %96 = vector.broadcast %cst_29 : f32 to vector<128x128xf32>
    %97 = arith.mulf %96, %95 : vector<128x128xf32>
    %98 = math.tanh %97 : vector<128x128xf32>
    %cst_30 = arith.constant 1.000000e+00 : f32
    %99 = vector.broadcast %cst_30 : f32 to vector<128x128xf32>
    %100 = arith.addf %98, %99 : vector<128x128xf32>
    %cst_31 = arith.constant 5.000000e-01 : f32
    %101 = vector.broadcast %cst_31 : f32 to vector<128x128xf32>
    %102 = arith.mulf %101, %100 : vector<128x128xf32>
    %103 = vector.extract_strided_slice %88 {offsets = [0, 256], sizes = [128, 128], strides = [1, 1]} : vector<128x384xf32> to vector<128x128xf32>
    %104 = arith.mulf %93, %1 : vector<128x128xf32>
    %105 = arith.addf %103, %104 : vector<128x128xf32>
    %106 = math.tanh %105 : vector<128x128xf32>
    %107 = arith.subf %1, %106 : vector<128x128xf32>
    %108 = arith.mulf %102, %107 : vector<128x128xf32>
    %109 = arith.addf %106, %108 : vector<128x128xf32>
    %c0_32 = arith.constant 0 : index
    %c0_33 = arith.constant 0 : index
    %110 = vector.load %arg10[%c0_32, %c0_33] : memref<1x128xf32, #tpu.memory_space<vmem>>, vector<1x128xf32>
    %111 = vector.broadcast %110 : vector<1x128xf32> to vector<128x128xf32>
    %112 = arith.mulf %109, %111 : vector<128x128xf32>
    %c0_34 = arith.constant 0 : index
    %c0_35 = arith.constant 0 : index
    %113 = vector.load %arg11[%c0_34, %c0_35] : memref<1x128xf32, #tpu.memory_space<vmem>>, vector<1x128xf32>
    %114 = vector.broadcast %113 : vector<1x128xf32> to vector<128x128xf32>
    %115 = arith.mulf %1, %114 : vector<128x128xf32>
    %116 = arith.addf %112, %115 : vector<128x128xf32>
    %117 = arith.mulf %116, %116 : vector<128x128xf32>
    %cst_36 = arith.constant dense<0.000000e+00> : vector<128xf32>
    %118 = vector.multi_reduction <add>, %117, %cst_36 [1] : vector<128x128xf32> to vector<128xf32>
    %119 = vector.shape_cast %118 : vector<128xf32> to vector<128x1xf32>
    %cst_37 = arith.constant 7.812500e-03 : f32
    %120 = vector.broadcast %cst_37 : f32 to vector<128x1xf32>
    %121 = arith.mulf %119, %120 : vector<128x1xf32>
    %122 = math.rsqrt %121 : vector<128x1xf32>
    %cst_38 = arith.constant 1.000000e+04 : f32
    %123 = vector.broadcast %cst_38 : f32 to vector<128x1xf32>
    %124 = arith.minimumf %122, %123 : vector<128x1xf32>
    %c0_39 = arith.constant 0 : index
    %125 = memref.load %arg12[%c0_39] : memref<1xf32, #tpu.memory_space<smem>>
    %126 = vector.broadcast %125 : f32 to vector<128x1xf32>
    %127 = arith.mulf %124, %126 : vector<128x1xf32>
    %128 = vector.broadcast %127 : vector<128x1xf32> to vector<128x128xf32>
    %129 = arith.mulf %116, %128 : vector<128x128xf32>
    %130 = arith.truncf %129 : vector<128x128xf32> to vector<128x128xbf16>
    %c0_40 = arith.constant 0 : index
    %c0_41 = arith.constant 0 : index
    %131 = vector.load %arg13[%c0_40, %c0_41] : memref<128x128xbf16, #tpu.memory_space<vmem>>, vector<128x128xbf16>
    tpu.vector_store %arg13[%c0_40, %c0_41], %130 {strides = array<i32>} : memref<128x128xbf16, #tpu.memory_space<vmem>>, vector<128x128xbf16>,
    return
  }
  func.func @transform_0(%arg0: i32) -> (i32, i32) {
    %c0_i32 = arith.constant 0 : i32
    %c0_i32_0 = arith.constant 0 : i32
    return %arg0, %c0_i32 : i32, i32
  }
  func.func @transform_1(%arg0: i32) -> (i32, i32) {
    %c0_i32 = arith.constant 0 : i32
    %c0_i32_0 = arith.constant 0 : i32
    %c0_i32_1 = arith.constant 0 : i32
    return %c0_i32, %c0_i32_0 : i32, i32
  }
  func.func @transform_2(%arg0: i32) -> (i32, i32) {
    %c0_i32 = arith.constant 0 : i32
    %c0_i32_0 = arith.constant 0 : i32
    %c0_i32_1 = arith.constant 0 : i32
    return %c0_i32, %c0_i32_0 : i32, i32
  }
  func.func @transform_3(%arg0: i32) -> (i32, i32) {
    %c0_i32 = arith.constant 0 : i32
    %c0_i32_0 = arith.constant 0 : i32
    %c0_i32_1 = arith.constant 0 : i32
    return %c0_i32, %c0_i32_0 : i32, i32
  }
  func.func @transform_4(%arg0: i32) -> (i32, i32) {
    %c0_i32 = arith.constant 0 : i32
    %c0_i32_0 = arith.constant 0 : i32
    %c0_i32_1 = arith.constant 0 : i32
    return %c0_i32, %c0_i32_0 : i32, i32
  }
  func.func @transform_5(%arg0: i32) -> (i32, i32) {
    %c0_i32 = arith.constant 0 : i32
    %c0_i32_0 = arith.constant 0 : i32
    %c0_i32_1 = arith.constant 0 : i32
    return %c0_i32, %c0_i32_0 : i32, i32
  }
  func.func @transform_6(%arg0: i32) -> (i32, i32) {
    %c0_i32 = arith.constant 0 : i32
    %c0_i32_0 = arith.constant 0 : i32
    %c0_i32_1 = arith.constant 0 : i32
    return %c0_i32, %c0_i32_0 : i32, i32
  }
  func.func @transform_7(%arg0: i32) -> (i32, i32) {
    %c0_i32 = arith.constant 0 : i32
    %c0_i32_0 = arith.constant 0 : i32
    %c0_i32_1 = arith.constant 0 : i32
    return %c0_i32, %c0_i32_0 : i32, i32
  }
  func.func @transform_8(%arg0: i32) -> (i32, i32) {
    %c0_i32 = arith.constant 0 : i32
    %c0_i32_0 = arith.constant 0 : i32
    %c0_i32_1 = arith.constant 0 : i32
    return %c0_i32, %c0_i32_0 : i32, i32
  }
  func.func @transform_9(%arg0: i32) -> (i32, i32) {
    %c0_i32 = arith.constant 0 : i32
    %c0_i32_0 = arith.constant 0 : i32
    %c0_i32_1 = arith.constant 0 : i32
    return %c0_i32, %c0_i32_0 : i32, i32
  }
  func.func @transform_10(%arg0: i32) -> (i32, i32) {
    %c0_i32 = arith.constant 0 : i32
    %c0_i32_0 = arith.constant 0 : i32
    %c0_i32_1 = arith.constant 0 : i32
    return %c0_i32, %c0_i32_0 : i32, i32
  }
  func.func @transform_11(%arg0: i32) -> i32 {
    %c0_i32 = arith.constant 0 : i32
    %c0_i32_0 = arith.constant 0 : i32
    return %c0_i32 : i32
  }
  func.func @transform_12(%arg0: i32) -> (i32, i32) {
    %c0_i32 = arith.constant 0 : i32
    %c0_i32_0 = arith.constant 0 : i32
    return %arg0, %c0_i32 : i32, i32
  }
}

</mosaic_0001>

<llo_original>
// kernel: tpu_custom_call.1
$region0: #{tpu_custom_call.1}
  #allocation0 [shape = 'u32[]', space=smem, size = 0x4, offset = 0x4, fixed_abs, tag = 'smem constant byte address 0x4 - core index']
  #allocation1 [shape = 'u32[144,128]{1,0:T(1,128)}', space=vmem, size = 0x12000, scoped, tag = 'internal scratch']
  #allocation2 [shape = 'f32[1]{0:T(128)S(6)}', space=smem, size = 0x200, scoped, tag = 'scoped memory for tpu_custom_call.1']
  %s0 = inlined_call_operand.hbm [shape: bf16[128,128], index: 0, kind: input, shape index: {}]
  %s1 = inlined_call_operand.hbm [shape: bf16[128,512], index: 1, kind: input, shape index: {}]
  %s2 = inlined_call_operand.hbm [shape: f32[1,256], index: 2, kind: input, shape index: {}]
  %s3 = inlined_call_operand.vmem [shape: f32[4,128], index: 3, kind: input, shape index: {}]
  %s4 = inlined_call_operand.vmem [shape: f32[4,128], index: 4, kind: input, shape index: {}]
  %s5 = inlined_call_operand.hbm [shape: f32[4,128], index: 5, kind: input, shape index: {}]
  %s6 = inlined_call_operand.vmem [shape: f32[1,128], index: 6, kind: input, shape index: {}]
  %s7 = inlined_call_operand.hbm [shape: bf16[128,384], index: 7, kind: input, shape index: {}]
  %s8 = inlined_call_operand.vmem [shape: f32[1,384], index: 8, kind: input, shape index: {}]
  %s9 = inlined_call_operand.vmem [shape: f32[1,128], index: 9, kind: input, shape index: {}]
  %s10 = inlined_call_operand.vmem [shape: f32[1,128], index: 10, kind: input, shape index: {}]
  %s11 = inlined_call_operand.<no memory space> [shape: f32[1], index: 11, kind: input, shape index: {}]
  %s12 = inlined_call_operand.hbm [shape: bf16[128,128], index: 12, kind: output, shape index: {}]
  %s13 = sld [smem:[#allocation0]]
  $region78: #{tpu_custom_call.1} parent=0
    _
  %s15 = ssub.s32 1, %s13
  %s16 = scalar_select 0, %s15, %s13
  %17 = sst [smem:[#allocation2]] %s11
  $region1: #{tpu_custom_call.1} parent=0
    #allocation3 [shape = 'u8[32768]{0}', space=vmem, size = 0x8000, scoped, tag = 'input window, operand 0, single buffered']
    #allocation4 [shape = 's32[1]{0}', space=sflag, size = 0x4, scoped, tag = 'scoped memory for tpu_custom_call.1']
    #allocation5 [shape = 's32[1]{0}', space=sflag, size = 0x4, scoped, tag = 'scoped memory for tpu_custom_call.1']
    #allocation6 [shape = 'u8[131072]{0}', space=vmem, size = 0x20000, scoped, tag = 'input window, operand 1, single buffered']
    #allocation7 [shape = 's32[1]{0}', space=sflag, size = 0x4, scoped, tag = 'scoped memory for tpu_custom_call.1']
    #allocation8 [shape = 'u8[1024]{0}', space=vmem, size = 0x400, scoped, tag = 'input window, operand 2, single buffered']
    #allocation9 [shape = 'u8[2048]{0}', space=vmem, size = 0x800, scoped, tag = 'input window, operand 5, single buffered']
    #allocation10 [shape = 's32[1]{0}', space=sflag, size = 0x4, scoped, tag = 'scoped memory for tpu_custom_call.1']
    #allocation11 [shape = 'u8[98304]{0}', space=vmem, size = 0x18000, scoped, tag = 'input window, operand 7, single buffered']
    #allocation12 [shape = 'u8[32768]{0}', space=vmem, size = 0x8000, scoped, tag = 'output window, operand 0, single buffered']
    %18 = vsyncpa [#allocation4], 0
    %19 = vsyncpa [#allocation7], 0
    %20 = vsyncpa [#allocation10], 0
    %21 = vsyncpa [#allocation5], 0
    // Predicated region
    $region2: #{tpu_custom_call.1} parent=1 // pred_check
      _
    $region3: #{tpu_custom_call.1} parent=1 // pred_check_branch
      %23 = sbr.rel (0) target = $region5
    $region4: #{tpu_custom_call.1} parent=1 // pred_region
      %s25 = ssub.s32 1024, 1024
      %26 = vsyncadd [#allocation4], %s25
      %s27 = sshll.u32 [#allocation3], 4
      %s28 = int_to_ptr.vmem [resolvable:$true] %s27
      %33 = dma.hbm_to_vmem [thread:$0]  %s0, 1024, %s28, [#allocation4], 64, 64, 4
    $region5: #{tpu_custom_call.1} parent=1 // pred_fallthru
      _
    // Predicated region
    $region6: #{tpu_custom_call.1} parent=1 // pred_check
      _
    $region7: #{tpu_custom_call.1} parent=1 // pred_check_branch
      %35 = sbr.rel (0) target = $region9
    $region8: #{tpu_custom_call.1} parent=1 // pred_region
      %s37 = ssub.s32 4096, 4096
      %38 = vsyncadd [#allocation7], %s37
      %s39 = sshll.u32 [#allocation6], 4
      %s40 = int_to_ptr.vmem [resolvable:$true] %s39
      %45 = dma.hbm_to_vmem [thread:$0]  %s1, 4096, %s40, [#allocation7], 256, 256, 16
    $region9: #{tpu_custom_call.1} parent=1 // pred_fallthru
      _
    // Predicated region
    $region10: #{tpu_custom_call.1} parent=1 // pred_check
      _
    $region11: #{tpu_custom_call.1} parent=1 // pred_check_branch
      %47 = sbr.rel (0) target = $region13
    $region12: #{tpu_custom_call.1} parent=1 // pred_region
      %s49 = ssub.s32 32, 32
      %50 = vsyncadd [#allocation7], %s49
      %s52 = sshll.u32 [#allocation8], 4
      %s53 = int_to_ptr.vmem [resolvable:$true] %s52
      %55 = dma.hbm_to_vmem [thread:$0]  %s2, 32, %s53, [#allocation7]
    $region13: #{tpu_custom_call.1} parent=1 // pred_fallthru
      _
    // Predicated region
    $region14: #{tpu_custom_call.1} parent=1 // pred_check
      _
    $region15: #{tpu_custom_call.1} parent=1 // pred_check_branch
      %57 = sbr.rel (0) target = $region17
    $region16: #{tpu_custom_call.1} parent=1 // pred_region
      _
    $region17: #{tpu_custom_call.1} parent=1 // pred_fallthru
      _
    // Predicated region
    $region18: #{tpu_custom_call.1} parent=1 // pred_check
      _
    $region19: #{tpu_custom_call.1} parent=1 // pred_check_branch
      %59 = sbr.rel (0) target = $region21
    $region20: #{tpu_custom_call.1} parent=1 // pred_region
      _
    $region21: #{tpu_custom_call.1} parent=1 // pred_fallthru
      _
    // Predicated region
    $region22: #{tpu_custom_call.1} parent=1 // pred_check
      _
    $region23: #{tpu_custom_call.1} parent=1 // pred_check_branch
      %61 = sbr.rel (0) target = $region25
    $region24: #{tpu_custom_call.1} parent=1 // pred_region
      %s63 = ssub.s32 64, 64
      %64 = vsyncadd [#allocation10], %s63
      %s66 = sshll.u32 [#allocation9], 4
      %s67 = int_to_ptr.vmem [resolvable:$true] %s66
      %69 = dma.hbm_to_vmem [thread:$0]  %s5, 64, %s67, [#allocation10]
    $region25: #{tpu_custom_call.1} parent=1 // pred_fallthru
      _
    // Predicated region
    $region26: #{tpu_custom_call.1} parent=1 // pred_check
      _
    $region27: #{tpu_custom_call.1} parent=1 // pred_check_branch
      %71 = sbr.rel (0) target = $region29
    $region28: #{tpu_custom_call.1} parent=1 // pred_region
      _
    $region29: #{tpu_custom_call.1} parent=1 // pred_fallthru
      _
    // Predicated region
    $region30: #{tpu_custom_call.1} parent=1 // pred_check
      _
    $region31: #{tpu_custom_call.1} parent=1 // pred_check_branch
      %73 = sbr.rel (0) target = $region33
    $region32: #{tpu_custom_call.1} parent=1 // pred_region
      %s75 = ssub.s32 3072, 3072
      %76 = vsyncadd [#allocation10], %s75
      %s77 = sshll.u32 [#allocation11], 4
      %s78 = int_to_ptr.vmem [resolvable:$true] %s77
      %83 = dma.hbm_to_vmem [thread:$0]  %s7, 3072, %s78, [#allocation10], 192, 192, 12
    $region33: #{tpu_custom_call.1} parent=1 // pred_fallthru
      _
    // Predicated region
    $region34: #{tpu_custom_call.1} parent=1 // pred_check
      _
    $region35: #{tpu_custom_call.1} parent=1 // pred_check_branch
      %85 = sbr.rel (0) target = $region37
    $region36: #{tpu_custom_call.1} parent=1 // pred_region
      _
    $region37: #{tpu_custom_call.1} parent=1 // pred_fallthru
      _
    // Predicated region
    $region38: #{tpu_custom_call.1} parent=1 // pred_check
      _
    $region39: #{tpu_custom_call.1} parent=1 // pred_check_branch
      %87 = sbr.rel (0) target = $region41
    $region40: #{tpu_custom_call.1} parent=1 // pred_region
      _
    $region41: #{tpu_custom_call.1} parent=1 // pred_fallthru
      _
    // Predicated region
    $region42: #{tpu_custom_call.1} parent=1 // pred_check
      _
    $region43: #{tpu_custom_call.1} parent=1 // pred_check_branch
      %89 = sbr.rel (0) target = $region45
    $region44: #{tpu_custom_call.1} parent=1 // pred_region
      _
    $region45: #{tpu_custom_call.1} parent=1 // pred_fallthru
      _
    // Predicated region
    $region46: #{tpu_custom_call.1} parent=1 // pred_check
      _
    $region47: #{tpu_custom_call.1} parent=1 // pred_check_branch
      %91 = sbr.rel (0) target = $region49
    $region48: #{tpu_custom_call.1} parent=1 // pred_region
      _
    $region49: #{tpu_custom_call.1} parent=1 // pred_fallthru
      _
    // Predicated region
    $region50: #{tpu_custom_call.1} parent=1 // pred_check
      _
    $region51: #{tpu_custom_call.1} parent=1 // pred_check_branch
      %93 = sbr.rel (0) target = $region53
    $region52: #{tpu_custom_call.1} parent=1 // pred_region
      %94 = dma.done [#allocation4], 1024
    $region53: #{tpu_custom_call.1} parent=1 // pred_fallthru
      _
    // Predicated region
    $region54: #{tpu_custom_call.1} parent=1 // pred_check
      _
    $region55: #{tpu_custom_call.1} parent=1 // pred_check_branch
      %96 = sbr.rel (0) target = $region57
    $region56: #{tpu_custom_call.1} parent=1 // pred_region
      %97 = dma.done [#allocation7], 4096
    $region57: #{tpu_custom_call.1} parent=1 // pred_fallthru
      _
    // Predicated region
    $region58: #{tpu_custom_call.1} parent=1 // pred_check
      _
    $region59: #{tpu_custom_call.1} parent=1 // pred_check_branch
      %99 = sbr.rel (0) target = $region61
    $region60: #{tpu_custom_call.1} parent=1 // pred_region
      %100 = dma.done [#allocation7], 32
    $region61: #{tpu_custom_call.1} parent=1 // pred_fallthru
      _
    // Predicated region
    $region62: #{tpu_custom_call.1} parent=1 // pred_check
      _
    $region63: #{tpu_custom_call.1} parent=1 // pred_check_branch
      %102 = sbr.rel (0) target = $region65
    $region64: #{tpu_custom_call.1} parent=1 // pred_region
      %103 = dma.done [#allocation10], 64
    $region65: #{tpu_custom_call.1} parent=1 // pred_fallthru
      _
    // Predicated region
    $region66: #{tpu_custom_call.1} parent=1 // pred_check
      _
    $region67: #{tpu_custom_call.1} parent=1 // pred_check_branch
      %105 = sbr.rel (0) target = $region69
    $region68: #{tpu_custom_call.1} parent=1 // pred_region
      %106 = dma.done [#allocation10], 3072
    $region69: #{tpu_custom_call.1} parent=1 // pred_fallthru
      _
    %v108 = vld [vmem:[#allocation3] sm:$0xf]
    %v109 = vld [vmem:[#allocation3 + $0x4] sm:$0xf]
    %v110 = vld [vmem:[#allocation3 + $0x8] sm:$0xf]
    %v111 = vld [vmem:[#allocation3 + $0xc] sm:$0xf]
    %v112 = vld [vmem:[#allocation3 + $0x10] sm:$0xf]
    %v113 = vld [vmem:[#allocation3 + $0x14] sm:$0xf]
    %v114 = vld [vmem:[#allocation3 + $0x18] sm:$0xf]
    %v115 = vld [vmem:[#allocation3 + $0x1c] sm:$0xf]
    %v116 = vld [vmem:[#allocation3 + $0x20] sm:$0xf]
    %v117 = vld [vmem:[#allocation3 + $0x24] sm:$0xf]
    %v118 = vld [vmem:[#allocation3 + $0x28] sm:$0xf]
    %v119 = vld [vmem:[#allocation3 + $0x2c] sm:$0xf]
    %v120 = vld [vmem:[#allocation3 + $0x30] sm:$0xf]
    %v121 = vld [vmem:[#allocation3 + $0x34] sm:$0xf]
    %v122 = vld [vmem:[#allocation3 + $0x38] sm:$0xf]
    %v123 = vld [vmem:[#allocation3 + $0x3c] sm:$0xf]
    %v124 = vunpack.c.l.bf16 %v108
    %v125 = vunpack.c.l.bf16 %v109
    %v126 = vunpack.c.l.bf16 %v110
    %v127 = vunpack.c.l.bf16 %v111
    %v128 = vunpack.c.l.bf16 %v112
    %v129 = vunpack.c.l.bf16 %v113
    %v130 = vunpack.c.l.bf16 %v114
    %v131 = vunpack.c.l.bf16 %v115
    %v132 = vunpack.c.l.bf16 %v116
    %v133 = vunpack.c.l.bf16 %v117
    %v134 = vunpack.c.l.bf16 %v118
    %v135 = vunpack.c.l.bf16 %v119
    %v136 = vunpack.c.l.bf16 %v120
    %v137 = vunpack.c.l.bf16 %v121
    %v138 = vunpack.c.l.bf16 %v122
    %v139 = vunpack.c.l.bf16 %v123
    %v140 = vld [vmem:[#allocation6] sm:$0xff]
    %v141 = vld [vmem:[#allocation6 + $0x8] sm:$0xff]
    %v142 = vld [vmem:[#allocation6 + $0x10] sm:$0xff]
    %v143 = vld [vmem:[#allocation6 + $0x18] sm:$0xff]
    %v144 = vld [vmem:[#allocation6 + $0x20] sm:$0xff]
    %v145 = vld [vmem:[#allocation6 + $0x28] sm:$0xff]
    %v146 = vld [vmem:[#allocation6 + $0x30] sm:$0xff]
    %v147 = vld [vmem:[#allocation6 + $0x38] sm:$0xff]
    %v148 = vld [vmem:[#allocation6 + $0x40] sm:$0xff]
    %v149 = vld [vmem:[#allocation6 + $0x48] sm:$0xff]
    %v150 = vld [vmem:[#allocation6 + $0x50] sm:$0xff]
    %v151 = vld [vmem:[#allocation6 + $0x58] sm:$0xff]
    %v152 = vld [vmem:[#allocation6 + $0x60] sm:$0xff]
    %v153 = vld [vmem:[#allocation6 + $0x68] sm:$0xff]
    %v154 = vld [vmem:[#allocation6 + $0x70] sm:$0xff]
    %v155 = vld [vmem:[#allocation6 + $0x78] sm:$0xff]
    %v156 = vld [vmem:[#allocation6 + $0x80] sm:$0xff]
    %v157 = vld [vmem:[#allocation6 + $0x88] sm:$0xff]
    %v158 = vld [vmem:[#allocation6 + $0x90] sm:$0xff]
    %v159 = vld [vmem:[#allocation6 + $0x98] sm:$0xff]
    %v160 = vld [vmem:[#allocation6 + $0xa0] sm:$0xff]
    %v161 = vld [vmem:[#allocation6 + $0xa8] sm:$0xff]
    %v162 = vld [vmem:[#allocation6 + $0xb0] sm:$0xff]
    %v163 = vld [vmem:[#allocation6 + $0xb8] sm:$0xff]
    %v164 = vld [vmem:[#allocation6 + $0xc0] sm:$0xff]
    %v165 = vld [vmem:[#allocation6 + $0xc8] sm:$0xff]
    %v166 = vld [vmem:[#allocation6 + $0xd0] sm:$0xff]
    %v167 = vld [vmem:[#allocation6 + $0xd8] sm:$0xff]
    %v168 = vld [vmem:[#allocation6 + $0xe0] sm:$0xff]
    %v169 = vld [vmem:[#allocation6 + $0xe8] sm:$0xff]
    %v170 = vld [vmem:[#allocation6 + $0xf0] sm:$0xff]
    %v171 = vld [vmem:[#allocation6 + $0xf8] sm:$0xff]
    %v188 = vunpack.c.l.b16 %v108
    %v189 = vunpack.c.l.b16 %v109
    %v190 = vunpack.c.l.b16 %v110
    %v191 = vunpack.c.l.b16 %v111
    %v192 = vunpack.c.l.b16 %v112
    %v193 = vunpack.c.l.b16 %v113
    %v194 = vunpack.c.l.b16 %v114
    %v195 = vunpack.c.l.b16 %v115
    %v196 = vunpack.c.l.b16 %v116
    %v197 = vunpack.c.l.b16 %v117
    %v198 = vunpack.c.l.b16 %v118
    %v199 = vunpack.c.l.b16 %v119
    %v200 = vunpack.c.l.b16 %v120
    %v201 = vunpack.c.l.b16 %v121
    %v202 = vunpack.c.l.b16 %v122
    %v203 = vunpack.c.l.b16 %v123
    %v204 = vpack.c.b16 %v189, %v188
    %v205 = vpack.c.b16 %v191, %v190
    %v206 = vpack.c.b16 %v193, %v192
    %v207 = vpack.c.b16 %v195, %v194
    %v208 = vpack.c.b16 %v197, %v196
    %v209 = vpack.c.b16 %v199, %v198
    %v210 = vpack.c.b16 %v201, %v200
    %v211 = vpack.c.b16 %v203, %v202
    %v252 = vunpack.c.l.b16 %v140
    %v253 = vunpack.c.h.b16 %v140
    %v254 = vunpack.c.l.b16 %v141
    %v255 = vunpack.c.h.b16 %v141
    %v256 = vunpack.c.l.b16 %v142
    %v257 = vunpack.c.h.b16 %v142
    %v258 = vunpack.c.l.b16 %v143
    %v259 = vunpack.c.h.b16 %v143
    %v260 = vunpack.c.l.b16 %v144
    %v261 = vunpack.c.h.b16 %v144
    %v262 = vunpack.c.l.b16 %v145
    %v263 = vunpack.c.h.b16 %v145
    %v264 = vunpack.c.l.b16 %v146
    %v265 = vunpack.c.h.b16 %v146
    %v266 = vunpack.c.l.b16 %v147
    %v267 = vunpack.c.h.b16 %v147
    %v268 = vunpack.c.l.b16 %v148
    %v269 = vunpack.c.h.b16 %v148
    %v270 = vunpack.c.l.b16 %v149
    %v271 = vunpack.c.h.b16 %v149
    %v272 = vunpack.c.l.b16 %v150
    %v273 = vunpack.c.h.b16 %v150
    %v274 = vunpack.c.l.b16 %v151
    %v275 = vunpack.c.h.b16 %v151
    %v276 = vunpack.c.l.b16 %v152
    %v277 = vunpack.c.h.b16 %v152
    %v278 = vunpack.c.l.b16 %v153
    %v279 = vunpack.c.h.b16 %v153
    %v280 = vunpack.c.l.b16 %v154
    %v281 = vunpack.c.h.b16 %v154
    %v282 = vunpack.c.l.b16 %v155
    %v283 = vunpack.c.h.b16 %v155
    %v284 = vunpack.c.l.b16 %v156
    %v285 = vunpack.c.h.b16 %v156
    %v286 = vunpack.c.l.b16 %v157
    %v287 = vunpack.c.h.b16 %v157
    %v288 = vunpack.c.l.b16 %v158
    %v289 = vunpack.c.h.b16 %v158
    %v290 = vunpack.c.l.b16 %v159
    %v291 = vunpack.c.h.b16 %v159
    %v292 = vunpack.c.l.b16 %v160
    %v293 = vunpack.c.h.b16 %v160
    %v294 = vunpack.c.l.b16 %v161
    %v295 = vunpack.c.h.b16 %v161
    %v296 = vunpack.c.l.b16 %v162
    %v297 = vunpack.c.h.b16 %v162
    %v298 = vunpack.c.l.b16 %v163
    %v299 = vunpack.c.h.b16 %v163
    %v300 = vunpack.c.l.b16 %v164
    %v301 = vunpack.c.h.b16 %v164
    %v302 = vunpack.c.l.b16 %v165
    %v303 = vunpack.c.h.b16 %v165
    %v304 = vunpack.c.l.b16 %v166
    %v305 = vunpack.c.h.b16 %v166
    %v306 = vunpack.c.l.b16 %v167
    %v307 = vunpack.c.h.b16 %v167
    %v308 = vunpack.c.l.b16 %v168
    %v309 = vunpack.c.h.b16 %v168
    %v310 = vunpack.c.l.b16 %v169
    %v311 = vunpack.c.h.b16 %v169
    %v312 = vunpack.c.l.b16 %v170
    %v313 = vunpack.c.h.b16 %v170
    %v314 = vunpack.c.l.b16 %v171
    %v315 = vunpack.c.h.b16 %v171
    %v316 = vpack.c.b16 %v256, %v252
    %v317 = vpack.c.b16 %v257, %v253
    %v318 = vpack.c.b16 %v258, %v254
    %v319 = vpack.c.b16 %v259, %v255
    %v320 = vpack.c.b16 %v264, %v260
    %v321 = vpack.c.b16 %v265, %v261
    %v322 = vpack.c.b16 %v266, %v262
    %v323 = vpack.c.b16 %v267, %v263
    %v324 = vpack.c.b16 %v272, %v268
    %v325 = vpack.c.b16 %v273, %v269
    %v326 = vpack.c.b16 %v274, %v270
    %v327 = vpack.c.b16 %v275, %v271
    %v328 = vpack.c.b16 %v280, %v276
    %v329 = vpack.c.b16 %v281, %v277
    %v330 = vpack.c.b16 %v282, %v278
    %v331 = vpack.c.b16 %v283, %v279
    %v332 = vpack.c.b16 %v288, %v284
    %v333 = vpack.c.b16 %v289, %v285
    %v334 = vpack.c.b16 %v290, %v286
    %v335 = vpack.c.b16 %v291, %v287
    %v336 = vpack.c.b16 %v296, %v292
    %v337 = vpack.c.b16 %v297, %v293
    %v338 = vpack.c.b16 %v298, %v294
    %v339 = vpack.c.b16 %v299, %v295
    %v340 = vpack.c.b16 %v304, %v300
    %v341 = vpack.c.b16 %v305, %v301
    %v342 = vpack.c.b16 %v306, %v302
    %v343 = vpack.c.b16 %v307, %v303
    %v344 = vpack.c.b16 %v312, %v308
    %v345 = vpack.c.b16 %v313, %v309
    %v346 = vpack.c.b16 %v314, %v310
    %v347 = vpack.c.b16 %v315, %v311
    %380 = vmatprep.subr.bf16.mxu0 %v345
    %381 = vmatpush1.bf16.msra.mxu0 %v344
    %382 = vmatprep.subr.bf16.mxu0 %v341
    %383 = vmatpush1.bf16.msra.mxu0 %v340
    %384 = vmatprep.subr.bf16.mxu0 %v337
    %385 = vmatpush1.bf16.msra.mxu0 %v336
    %386 = vmatprep.subr.bf16.mxu0 %v333
    %387 = vmatpush1.bf16.msra.mxu0 %v332
    %388 = vmatprep.subr.bf16.mxu0 %v329
    %389 = vmatpush1.bf16.msra.mxu0 %v328
    %390 = vmatprep.subr.bf16.mxu0 %v325
    %391 = vmatpush1.bf16.msra.mxu0 %v324
    %392 = vmatprep.subr.bf16.mxu0 %v321
    %393 = vmatpush1.bf16.msra.mxu0 %v320
    %394 = vmatprep.subr.bf16.mxu0 %v317
    %395 = vmatpush1.bf16.msra.mxu0 %v316
    %396 = vmatprep.subr.bf16.mxu0 0
    %397 = vmatpush2.bf16.msra.mxu0 0
    %398 = vmatprep.subr.bf16.mxu0 0
    %399 = vmatpush2.bf16.msra.mxu0 0
    %400 = vmatprep.subr.bf16.mxu0 0
    %401 = vmatpush2.bf16.msra.mxu0 0
    %402 = vmatprep.subr.bf16.mxu0 0
    %403 = vmatpush2.bf16.msra.mxu0 0
    %404 = vmatprep.subr.bf16.mxu0 0
    %405 = vmatpush2.bf16.msra.mxu0 0
    %406 = vmatprep.subr.bf16.mxu0 0
    %407 = vmatpush2.bf16.msra.mxu0 0
    %408 = vmatprep.subr.bf16.mxu0 0
    %409 = vmatpush2.bf16.msra.mxu0 0
    %410 = vmatprep.subr.bf16.mxu0 0
    %411 = vmatpush2.bf16.msra.mxu0 0
    %412 = vmatprep.mubr.bf16.mxu0 0
    %413 = vmatmul.mubr.bf16.gmra.mxu0 %v204
    %v414 = vpop.f32.mrf.mxu0
    %v415 = vadd.f32 0.0, %v414
    %v416 = vpop.f32.mrf.mxu0
    %v417 = vadd.f32 0.0, %v416
    %v418 = vpop.f32.mrf.mxu0
    %v419 = vadd.f32 0.0, %v418
    %v420 = vpop.f32.mrf.mxu0
    %v421 = vadd.f32 0.0, %v420
    %422 = vmatprep.mubr.bf16.mxu0 0
    %423 = vmatmul.mubr.bf16.gmra.mxu0 %v205
    %v424 = vpop.f32.mrf.mxu0
    %v425 = vadd.f32 0.0, %v424
    %v426 = vpop.f32.mrf.mxu0
    %v427 = vadd.f32 0.0, %v426
    %v428 = vpop.f32.mrf.mxu0
    %v429 = vadd.f32 0.0, %v428
    %v430 = vpop.f32.mrf.mxu0
    %v431 = vadd.f32 0.0, %v430
    %432 = vmatprep.mubr.bf16.mxu0 0
    %433 = vmatmul.mubr.bf16.gmra.mxu0 %v206
    %v434 = vpop.f32.mrf.mxu0
    %v435 = vadd.f32 0.0, %v434
    %v436 = vpop.f32.mrf.mxu0
    %v437 = vadd.f32 0.0, %v436
    %v438 = vpop.f32.mrf.mxu0
    %v439 = vadd.f32 0.0, %v438
    %v440 = vpop.f32.mrf.mxu0
    %v441 = vadd.f32 0.0, %v440
    %442 = vmatprep.mubr.bf16.mxu0 0
    %443 = vmatmul.mubr.bf16.gmra.mxu0 %v207
    %v444 = vpop.f32.mrf.mxu0
    %v445 = vadd.f32 0.0, %v444
    %v446 = vpop.f32.mrf.mxu0
    %v447 = vadd.f32 0.0, %v446
    %v448 = vpop.f32.mrf.mxu0
    %v449 = vadd.f32 0.0, %v448
    %v450 = vpop.f32.mrf.mxu0
    %v451 = vadd.f32 0.0, %v450
    %452 = vmatprep.mubr.bf16.mxu0 0
    %453 = vmatmul.mubr.bf16.gmra.mxu0 %v208
    %v454 = vpop.f32.mrf.mxu0
    %v455 = vadd.f32 0.0, %v454
    %v456 = vpop.f32.mrf.mxu0
    %v457 = vadd.f32 0.0, %v456
    %v458 = vpop.f32.mrf.mxu0
    %v459 = vadd.f32 0.0, %v458
    %v460 = vpop.f32.mrf.mxu0
    %v461 = vadd.f32 0.0, %v460
    %462 = vmatprep.mubr.bf16.mxu0 0
    %463 = vmatmul.mubr.bf16.gmra.mxu0 %v209
    %v464 = vpop.f32.mrf.mxu0
    %v465 = vadd.f32 0.0, %v464
    %v466 = vpop.f32.mrf.mxu0
    %v467 = vadd.f32 0.0, %v466
    %v468 = vpop.f32.mrf.mxu0
    %v469 = vadd.f32 0.0, %v468
    %v470 = vpop.f32.mrf.mxu0
    %v471 = vadd.f32 0.0, %v470
    %472 = vmatprep.mubr.bf16.mxu0 0
    %473 = vmatmul.mubr.bf16.gmra.mxu0 %v210
    %v474 = vpop.f32.mrf.mxu0
    %v475 = vadd.f32 0.0, %v474
    %v476 = vpop.f32.mrf.mxu0
    %v477 = vadd.f32 0.0, %v476
    %v478 = vpop.f32.mrf.mxu0
    %v479 = vadd.f32 0.0, %v478
    %v480 = vpop.f32.mrf.mxu0
    %v481 = vadd.f32 0.0, %v480
    %482 = vmatprep.mubr.bf16.mxu0 0
    %483 = vmatmul.mubr.bf16.gmra.mxu0 %v211
    %v484 = vpop.f32.mrf.mxu0
    %v485 = vadd.f32 0.0, %v484
    %v486 = vpop.f32.mrf.mxu0
    %v487 = vadd.f32 0.0, %v486
    %v488 = vpop.f32.mrf.mxu0
    %v489 = vadd.f32 0.0, %v488
    %v490 = vpop.f32.mrf.mxu0
    %v491 = vadd.f32 0.0, %v490
    %492 = vdwg.mxu0
    %493 = vmatprep.subr.bf16.mxu0 %v347
    %494 = vmatpush1.bf16.msra.mxu0 %v346
    %495 = vmatprep.subr.bf16.mxu0 %v343
    %496 = vmatpush1.bf16.msra.mxu0 %v342
    %497 = vmatprep.subr.bf16.mxu0 %v339
    %498 = vmatpush1.bf16.msra.mxu0 %v338
    %499 = vmatprep.subr.bf16.mxu0 %v335
    %500 = vmatpush1.bf16.msra.mxu0 %v334
    %501 = vmatprep.subr.bf16.mxu0 %v331
    %502 = vmatpush1.bf16.msra.mxu0 %v330
    %503 = vmatprep.subr.bf16.mxu0 %v327
    %504 = vmatpush1.bf16.msra.mxu0 %v326
    %505 = vmatprep.subr.bf16.mxu0 %v323
    %506 = vmatpush1.bf16.msra.mxu0 %v322
    %507 = vmatprep.subr.bf16.mxu0 %v319
    %508 = vmatpush1.bf16.msra.mxu0 %v318
    %509 = vmatprep.subr.bf16.mxu0 0
    %510 = vmatpush2.bf16.msra.mxu0 0
    %511 = vmatprep.subr.bf16.mxu0 0
    %512 = vmatpush2.bf16.msra.mxu0 0
    %513 = vmatprep.subr.bf16.mxu0 0
    %514 = vmatpush2.bf16.msra.mxu0 0
    %515 = vmatprep.subr.bf16.mxu0 0
    %516 = vmatpush2.bf16.msra.mxu0 0
    %517 = vmatprep.subr.bf16.mxu0 0
    %518 = vmatpush2.bf16.msra.mxu0 0
    %519 = vmatprep.subr.bf16.mxu0 0
    %520 = vmatpush2.bf16.msra.mxu0 0
    %521 = vmatprep.subr.bf16.mxu0 0
    %522 = vmatpush2.bf16.msra.mxu0 0
    %523 = vmatprep.subr.bf16.mxu0 0
    %524 = vmatpush2.bf16.msra.mxu0 0
    %525 = vmatprep.mubr.bf16.mxu0 0
    %526 = vmatmul.mubr.bf16.gmra.mxu0 %v204
    %v527 = vpop.f32.mrf.mxu0
    %v528 = vadd.f32 0.0, %v527
    %v529 = vpop.f32.mrf.mxu0
    %v530 = vadd.f32 0.0, %v529
    %v531 = vpop.f32.mrf.mxu0
    %v532 = vadd.f32 0.0, %v531
    %v533 = vpop.f32.mrf.mxu0
    %v534 = vadd.f32 0.0, %v533
    %535 = vmatprep.mubr.bf16.mxu0 0
    %536 = vmatmul.mubr.bf16.gmra.mxu0 %v205
    %v537 = vpop.f32.mrf.mxu0
    %v538 = vadd.f32 0.0, %v537
    %v539 = vpop.f32.mrf.mxu0
    %v540 = vadd.f32 0.0, %v539
    %v541 = vpop.f32.mrf.mxu0
    %v542 = vadd.f32 0.0, %v541
    %v543 = vpop.f32.mrf.mxu0
    %v544 = vadd.f32 0.0, %v543
    %545 = vmatprep.mubr.bf16.mxu0 0
    %546 = vmatmul.mubr.bf16.gmra.mxu0 %v206
    %v547 = vpop.f32.mrf.mxu0
    %v548 = vadd.f32 0.0, %v547
    %v549 = vpop.f32.mrf.mxu0
    %v550 = vadd.f32 0.0, %v549
    %v551 = vpop.f32.mrf.mxu0
    %v552 = vadd.f32 0.0, %v551
    %v553 = vpop.f32.mrf.mxu0
    %v554 = vadd.f32 0.0, %v553
    %555 = vmatprep.mubr.bf16.mxu0 0
    %556 = vmatmul.mubr.bf16.gmra.mxu0 %v207
    %v557 = vpop.f32.mrf.mxu0
    %v558 = vadd.f32 0.0, %v557
    %v559 = vpop.f32.mrf.mxu0
    %v560 = vadd.f32 0.0, %v559
    %v561 = vpop.f32.mrf.mxu0
    %v562 = vadd.f32 0.0, %v561
    %v563 = vpop.f32.mrf.mxu0
    %v564 = vadd.f32 0.0, %v563
    %565 = vmatprep.mubr.bf16.mxu0 0
    %566 = vmatmul.mubr.bf16.gmra.mxu0 %v208
    %v567 = vpop.f32.mrf.mxu0
    %v568 = vadd.f32 0.0, %v567
    %v569 = vpop.f32.mrf.mxu0
    %v570 = vadd.f32 0.0, %v569
    %v571 = vpop.f32.mrf.mxu0
    %v572 = vadd.f32 0.0, %v571
    %v573 = vpop.f32.mrf.mxu0
    %v574 = vadd.f32 0.0, %v573
    %575 = vmatprep.mubr.bf16.mxu0 0
    %576 = vmatmul.mubr.bf16.gmra.mxu0 %v209
    %v577 = vpop.f32.mrf.mxu0
    %v578 = vadd.f32 0.0, %v577
    %v579 = vpop.f32.mrf.mxu0
    %v580 = vadd.f32 0.0, %v579
    %v581 = vpop.f32.mrf.mxu0
    %v582 = vadd.f32 0.0, %v581
    %v583 = vpop.f32.mrf.mxu0
    %v584 = vadd.f32 0.0, %v583
    %585 = vmatprep.mubr.bf16.mxu0 0
    %586 = vmatmul.mubr.bf16.gmra.mxu0 %v210
    %v587 = vpop.f32.mrf.mxu0
    %v588 = vadd.f32 0.0, %v587
    %v589 = vpop.f32.mrf.mxu0
    %v590 = vadd.f32 0.0, %v589
    %v591 = vpop.f32.mrf.mxu0
    %v592 = vadd.f32 0.0, %v591
    %v593 = vpop.f32.mrf.mxu0
    %v594 = vadd.f32 0.0, %v593
    %595 = vmatprep.mubr.bf16.mxu0 0
    %596 = vmatmul.mubr.bf16.gmra.mxu0 %v211
    %v597 = vpop.f32.mrf.mxu0
    %v598 = vadd.f32 0.0, %v597
    %v599 = vpop.f32.mrf.mxu0
    %v600 = vadd.f32 0.0, %v599
    %v601 = vpop.f32.mrf.mxu0
    %v602 = vadd.f32 0.0, %v601
    %v603 = vpop.f32.mrf.mxu0
    %v604 = vadd.f32 0.0, %v603
    %605 = vdwg.mxu0
    %v606 = vld [vmem:[#allocation8] sm:$0x3]
    %v608 = vlaneseq
    %v609 = vshrl.u32 %v608, 7
    %v610 = vsub.s32 0, %v609
    %v611 = vrot.slane %v606, %v610
    %v612 = vlaneseq
    %v613 = vshrl.u32 %v612, 7
    %v614 = vsub.s32 1, %v613
    %v615 = vrot.slane %v606, %v614
    %v618 = vadd.f32 %v415, %v611
    %v619 = vadd.f32 %v417, %v615
    %v620 = vadd.f32 %v419, %v611
    %v621 = vadd.f32 %v421, %v615
    %v622 = vadd.f32 %v425, %v611
    %v623 = vadd.f32 %v427, %v615
    %v624 = vadd.f32 %v429, %v611
    %v625 = vadd.f32 %v431, %v615
    %v626 = vadd.f32 %v435, %v611
    %v627 = vadd.f32 %v437, %v615
    %v628 = vadd.f32 %v439, %v611
    %v629 = vadd.f32 %v441, %v615
    %v630 = vadd.f32 %v445, %v611
    %v631 = vadd.f32 %v447, %v615
    %v632 = vadd.f32 %v449, %v611
    %v633 = vadd.f32 %v451, %v615
    %v634 = vadd.f32 %v455, %v611
    %v635 = vadd.f32 %v457, %v615
    %v636 = vadd.f32 %v459, %v611
    %v637 = vadd.f32 %v461, %v615
    %v638 = vadd.f32 %v465, %v611
    %v639 = vadd.f32 %v467, %v615
    %v640 = vadd.f32 %v469, %v611
    %v641 = vadd.f32 %v471, %v615
    %v642 = vadd.f32 %v475, %v611
    %v643 = vadd.f32 %v477, %v615
    %v644 = vadd.f32 %v479, %v611
    %v645 = vadd.f32 %v481, %v615
    %v646 = vadd.f32 %v485, %v611
    %v647 = vadd.f32 %v487, %v615
    %v648 = vadd.f32 %v489, %v611
    %v649 = vadd.f32 %v491, %v615
    %v650 = vmul.f32 %v619, 0.5
    %v651 = vmul.f32 %v621, 0.5
    %v652 = vmul.f32 %v623, 0.5
    %v653 = vmul.f32 %v625, 0.5
    %v654 = vmul.f32 %v627, 0.5
    %v655 = vmul.f32 %v629, 0.5
    %v656 = vmul.f32 %v631, 0.5
    %v657 = vmul.f32 %v633, 0.5
    %v658 = vmul.f32 %v635, 0.5
    %v659 = vmul.f32 %v637, 0.5
    %v660 = vmul.f32 %v639, 0.5
    %v661 = vmul.f32 %v641, 0.5
    %v662 = vmul.f32 %v643, 0.5
    %v663 = vmul.f32 %v645, 0.5
    %v664 = vmul.f32 %v647, 0.5
    %v665 = vmul.f32 %v649, 0.5
    %v666 = vmul.f32 %v619, 0.044715
    %v667 = vmul.f32 %v621, 0.044715
    %v668 = vmul.f32 %v623, 0.044715
    %v669 = vmul.f32 %v625, 0.044715
    %v670 = vmul.f32 %v627, 0.044715
    %v671 = vmul.f32 %v629, 0.044715
    %v672 = vmul.f32 %v631, 0.044715
    %v673 = vmul.f32 %v633, 0.044715
    %v674 = vmul.f32 %v635, 0.044715
    %v675 = vmul.f32 %v637, 0.044715
    %v676 = vmul.f32 %v639, 0.044715
    %v677 = vmul.f32 %v641, 0.044715
    %v678 = vmul.f32 %v643, 0.044715
    %v679 = vmul.f32 %v645, 0.044715
    %v680 = vmul.f32 %v647, 0.044715
    %v681 = vmul.f32 %v649, 0.044715
    %v682 = vmul.f32 %v666, %v619
    %v683 = vmul.f32 %v667, %v621
    %v684 = vmul.f32 %v668, %v623
    %v685 = vmul.f32 %v669, %v625
    %v686 = vmul.f32 %v670, %v627
    %v687 = vmul.f32 %v671, %v629
    %v688 = vmul.f32 %v672, %v631
    %v689 = vmul.f32 %v673, %v633
    %v690 = vmul.f32 %v674, %v635
    %v691 = vmul.f32 %v675, %v637
    %v692 = vmul.f32 %v676, %v639
    %v693 = vmul.f32 %v677, %v641
    %v694 = vmul.f32 %v678, %v643
    %v695 = vmul.f32 %v679, %v645
    %v696 = vmul.f32 %v680, %v647
    %v697 = vmul.f32 %v681, %v649
    %v698 = vmul.f32 %v682, %v619
    %v699 = vmul.f32 %v683, %v621
    %v700 = vmul.f32 %v684, %v623
    %v701 = vmul.f32 %v685, %v625
    %v702 = vmul.f32 %v686, %v627
    %v703 = vmul.f32 %v687, %v629
    %v704 = vmul.f32 %v688, %v631
    %v705 = vmul.f32 %v689, %v633
    %v706 = vmul.f32 %v690, %v635
    %v707 = vmul.f32 %v691, %v637
    %v708 = vmul.f32 %v692, %v639
    %v709 = vmul.f32 %v693, %v641
    %v710 = vmul.f32 %v694, %v643
    %v711 = vmul.f32 %v695, %v645
    %v712 = vmul.f32 %v696, %v647
    %v713 = vmul.f32 %v697, %v649
    %v714 = vadd.f32 %v619, %v698
    %v715 = vadd.f32 %v621, %v699
    %v716 = vadd.f32 %v623, %v700
    %v717 = vadd.f32 %v625, %v701
    %v718 = vadd.f32 %v627, %v702
    %v719 = vadd.f32 %v629, %v703
    %v720 = vadd.f32 %v631, %v704
    %v721 = vadd.f32 %v633, %v705
    %v722 = vadd.f32 %v635, %v706
    %v723 = vadd.f32 %v637, %v707
    %v724 = vadd.f32 %v639, %v708
    %v725 = vadd.f32 %v641, %v709
    %v726 = vadd.f32 %v643, %v710
    %v727 = vadd.f32 %v645, %v711
    %v728 = vadd.f32 %v647, %v712
    %v729 = vadd.f32 %v649, %v713
    %v730 = vmul.f32 %v714, 0.7978846
    %v731 = vmul.f32 %v715, 0.7978846
    %v732 = vmul.f32 %v716, 0.7978846
    %v733 = vmul.f32 %v717, 0.7978846
    %v734 = vmul.f32 %v718, 0.7978846
    %v735 = vmul.f32 %v719, 0.7978846
    %v736 = vmul.f32 %v720, 0.7978846
    %v737 = vmul.f32 %v721, 0.7978846
    %v738 = vmul.f32 %v722, 0.7978846
    %v739 = vmul.f32 %v723, 0.7978846
    %v740 = vmul.f32 %v724, 0.7978846
    %v741 = vmul.f32 %v725, 0.7978846
    %v742 = vmul.f32 %v726, 0.7978846
    %v743 = vmul.f32 %v727, 0.7978846
    %v744 = vmul.f32 %v728, 0.7978846
    %v745 = vmul.f32 %v729, 0.7978846
    %v746 = vtanh.pop %v730
    %v747 = vtanh.pop %v731
    %v748 = vtanh.pop %v732
    %v749 = vtanh.pop %v733
    %v750 = vtanh.pop %v734
    %v751 = vtanh.pop %v735
    %v752 = vtanh.pop %v736
    %v753 = vtanh.pop %v737
    %v754 = vtanh.pop %v738
    %v755 = vtanh.pop %v739
    %v756 = vtanh.pop %v740
    %v757 = vtanh.pop %v741
    %v758 = vtanh.pop %v742
    %v759 = vtanh.pop %v743
    %v760 = vtanh.pop %v744
    %v761 = vtanh.pop %v745
    %v762 = vadd.f32 %v746, 1.0
    %v763 = vadd.f32 %v747, 1.0
    %v764 = vadd.f32 %v748, 1.0
    %v765 = vadd.f32 %v749, 1.0
    %v766 = vadd.f32 %v750, 1.0
    %v767 = vadd.f32 %v751, 1.0
    %v768 = vadd.f32 %v752, 1.0
    %v769 = vadd.f32 %v753, 1.0
    %v770 = vadd.f32 %v754, 1.0
    %v771 = vadd.f32 %v755, 1.0
    %v772 = vadd.f32 %v756, 1.0
    %v773 = vadd.f32 %v757, 1.0
    %v774 = vadd.f32 %v758, 1.0
    %v775 = vadd.f32 %v759, 1.0
    %v776 = vadd.f32 %v760, 1.0
    %v777 = vadd.f32 %v761, 1.0
    %v778 = vmul.f32 %v650, %v762
    %v779 = vmul.f32 %v651, %v763
    %v780 = vmul.f32 %v652, %v764
    %v781 = vmul.f32 %v653, %v765
    %v782 = vmul.f32 %v654, %v766
    %v783 = vmul.f32 %v655, %v767
    %v784 = vmul.f32 %v656, %v768
    %v785 = vmul.f32 %v657, %v769
    %v786 = vmul.f32 %v658, %v770
    %v787 = vmul.f32 %v659, %v771
    %v788 = vmul.f32 %v660, %v772
    %v789 = vmul.f32 %v661, %v773
    %v790 = vmul.f32 %v662, %v774
    %v791 = vmul.f32 %v663, %v775
    %v792 = vmul.f32 %v664, %v776
    %v793 = vmul.f32 %v665, %v777
    %v794 = vmul.f32 %v618, %v778
    %v795 = vmul.f32 %v620, %v779
    %v796 = vmul.f32 %v622, %v780
    %v797 = vmul.f32 %v624, %v781
    %v798 = vmul.f32 %v626, %v782
    %v799 = vmul.f32 %v628, %v783
    %v800 = vmul.f32 %v630, %v784
    %v801 = vmul.f32 %v632, %v785
    %v802 = vmul.f32 %v634, %v786
    %v803 = vmul.f32 %v636, %v787
    %v804 = vmul.f32 %v638, %v788
    %v805 = vmul.f32 %v640, %v789
    %v806 = vmul.f32 %v642, %v790
    %v807 = vmul.f32 %v644, %v791
    %v808 = vmul.f32 %v646, %v792
    %v809 = vmul.f32 %v648, %v793
    %v810 = vld [vmem:[%s3] sm:$0xf]
    %v811 = vld [vmem:[%s4] sm:$0xf]
    %v812 = vld [vmem:[#allocation9] sm:$0xf]
    %v813 = vlaneseq
    %v814 = vshrl.u32 %v813, 7
    %v815 = vsub.s32 0, %v814
    %v816 = vrot.slane %v810, %v815
    %v817 = vmul.f32 %v794, %v816
    %v818 = vmul.f32 %v795, %v816
    %v819 = vmul.f32 %v796, %v816
    %v820 = vmul.f32 %v797, %v816
    %v821 = vmul.f32 %v798, %v816
    %v822 = vmul.f32 %v799, %v816
    %v823 = vmul.f32 %v800, %v816
    %v824 = vmul.f32 %v801, %v816
    %v825 = vmul.f32 %v802, %v816
    %v826 = vmul.f32 %v803, %v816
    %v827 = vmul.f32 %v804, %v816
    %v828 = vmul.f32 %v805, %v816
    %v829 = vmul.f32 %v806, %v816
    %v830 = vmul.f32 %v807, %v816
    %v831 = vmul.f32 %v808, %v816
    %v832 = vmul.f32 %v809, %v816
    %v833 = vlaneseq
    %v834 = vshrl.u32 %v833, 7
    %v835 = vsub.s32 0, %v834
    %v836 = vrot.slane %v811, %v835
    %v837 = vadd.f32 %v817, %v836
    %v838 = vadd.f32 %v818, %v836
    %v839 = vadd.f32 %v819, %v836
    %v840 = vadd.f32 %v820, %v836
    %v841 = vadd.f32 %v821, %v836
    %v842 = vadd.f32 %v822, %v836
    %v843 = vadd.f32 %v823, %v836
    %v844 = vadd.f32 %v824, %v836
    %v845 = vadd.f32 %v825, %v836
    %v846 = vadd.f32 %v826, %v836
    %v847 = vadd.f32 %v827, %v836
    %v848 = vadd.f32 %v828, %v836
    %v849 = vadd.f32 %v829, %v836
    %v850 = vadd.f32 %v830, %v836
    %v851 = vadd.f32 %v831, %v836
    %v852 = vadd.f32 %v832, %v836
    %v853 = vmax.f32 %v837, 0.0
    %v854 = vmax.f32 %v838, 0.0
    %v855 = vmax.f32 %v839, 0.0
    %v856 = vmax.f32 %v840, 0.0
    %v857 = vmax.f32 %v841, 0.0
    %v858 = vmax.f32 %v842, 0.0
    %v859 = vmax.f32 %v843, 0.0
    %v860 = vmax.f32 %v844, 0.0
    %v861 = vmax.f32 %v845, 0.0
    %v862 = vmax.f32 %v846, 0.0
    %v863 = vmax.f32 %v847, 0.0
    %v864 = vmax.f32 %v848, 0.0
    %v865 = vmax.f32 %v849, 0.0
    %v866 = vmax.f32 %v850, 0.0
    %v867 = vmax.f32 %v851, 0.0
    %v868 = vmax.f32 %v852, 0.0
    %v869 = vlaneseq
    %v870 = vshrl.u32 %v869, 7
    %v871 = vsub.s32 0, %v870
    %v872 = vrot.slane %v812, %v871
    %v873 = vmul.f32 %v853, %v872
    %v874 = vmul.f32 %v854, %v872
    %v875 = vmul.f32 %v855, %v872
    %v876 = vmul.f32 %v856, %v872
    %v877 = vmul.f32 %v857, %v872
    %v878 = vmul.f32 %v858, %v872
    %v879 = vmul.f32 %v859, %v872
    %v880 = vmul.f32 %v860, %v872
    %v881 = vmul.f32 %v861, %v872
    %v882 = vmul.f32 %v862, %v872
    %v883 = vmul.f32 %v863, %v872
    %v884 = vmul.f32 %v864, %v872
    %v885 = vmul.f32 %v865, %v872
    %v886 = vmul.f32 %v866, %v872
    %v887 = vmul.f32 %v867, %v872
    %v888 = vmul.f32 %v868, %v872
    %v889 = vadd.f32 %v873, 0.0
    %v890 = vadd.f32 %v874, 0.0
    %v891 = vadd.f32 %v875, 0.0
    %v892 = vadd.f32 %v876, 0.0
    %v893 = vadd.f32 %v877, 0.0
    %v894 = vadd.f32 %v878, 0.0
    %v895 = vadd.f32 %v879, 0.0
    %v896 = vadd.f32 %v880, 0.0
    %v897 = vadd.f32 %v881, 0.0
    %v898 = vadd.f32 %v882, 0.0
    %v899 = vadd.f32 %v883, 0.0
    %v900 = vadd.f32 %v884, 0.0
    %v901 = vadd.f32 %v885, 0.0
    %v902 = vadd.f32 %v886, 0.0
    %v903 = vadd.f32 %v887, 0.0
    %v904 = vadd.f32 %v888, 0.0
    %v905 = vlaneseq
    %v906 = vshrl.u32 %v905, 7
    %v907 = vsub.s32 1, %v906
    %v908 = vrot.slane %v810, %v907
    %v909 = vmul.f32 %v794, %v908
    %v910 = vmul.f32 %v795, %v908
    %v911 = vmul.f32 %v796, %v908
    %v912 = vmul.f32 %v797, %v908
    %v913 = vmul.f32 %v798, %v908
    %v914 = vmul.f32 %v799, %v908
    %v915 = vmul.f32 %v800, %v908
    %v916 = vmul.f32 %v801, %v908
    %v917 = vmul.f32 %v802, %v908
    %v918 = vmul.f32 %v803, %v908
    %v919 = vmul.f32 %v804, %v908
    %v920 = vmul.f32 %v805, %v908
    %v921 = vmul.f32 %v806, %v908
    %v922 = vmul.f32 %v807, %v908
    %v923 = vmul.f32 %v808, %v908
    %v924 = vmul.f32 %v809, %v908
    %v925 = vlaneseq
    %v926 = vshrl.u32 %v925, 7
    %v927 = vsub.s32 1, %v926
    %v928 = vrot.slane %v811, %v927
    %v929 = vadd.f32 %v909, %v928
    %v930 = vadd.f32 %v910, %v928
    %v931 = vadd.f32 %v911, %v928
    %v932 = vadd.f32 %v912, %v928
    %v933 = vadd.f32 %v913, %v928
    %v934 = vadd.f32 %v914, %v928
    %v935 = vadd.f32 %v915, %v928
    %v936 = vadd.f32 %v916, %v928
    %v937 = vadd.f32 %v917, %v928
    %v938 = vadd.f32 %v918, %v928
    %v939 = vadd.f32 %v919, %v928
    %v940 = vadd.f32 %v920, %v928
    %v941 = vadd.f32 %v921, %v928
    %v942 = vadd.f32 %v922, %v928
    %v943 = vadd.f32 %v923, %v928
    %v944 = vadd.f32 %v924, %v928
    %v945 = vmax.f32 %v929, 0.0
    %v946 = vmax.f32 %v930, 0.0
    %v947 = vmax.f32 %v931, 0.0
    %v948 = vmax.f32 %v932, 0.0
    %v949 = vmax.f32 %v933, 0.0
    %v950 = vmax.f32 %v934, 0.0
    %v951 = vmax.f32 %v935, 0.0
    %v952 = vmax.f32 %v936, 0.0
    %v953 = vmax.f32 %v937, 0.0
    %v954 = vmax.f32 %v938, 0.0
    %v955 = vmax.f32 %v939, 0.0
    %v956 = vmax.f32 %v940, 0.0
    %v957 = vmax.f32 %v941, 0.0
    %v958 = vmax.f32 %v942, 0.0
    %v959 = vmax.f32 %v943, 0.0
    %v960 = vmax.f32 %v944, 0.0
    %v961 = vlaneseq
    %v962 = vshrl.u32 %v961, 7
    %v963 = vsub.s32 1, %v962
    %v964 = vrot.slane %v812, %v963
    %v965 = vmul.f32 %v945, %v964
    %v966 = vmul.f32 %v946, %v964
    %v967 = vmul.f32 %v947, %v964
    %v968 = vmul.f32 %v948, %v964
    %v969 = vmul.f32 %v949, %v964
    %v970 = vmul.f32 %v950, %v964
    %v971 = vmul.f32 %v951, %v964
    %v972 = vmul.f32 %v952, %v964
    %v973 = vmul.f32 %v953, %v964
    %v974 = vmul.f32 %v954, %v964
    %v975 = vmul.f32 %v955, %v964
    %v976 = vmul.f32 %v956, %v964
    %v977 = vmul.f32 %v957, %v964
    %v978 = vmul.f32 %v958, %v964
    %v979 = vmul.f32 %v959, %v964
    %v980 = vmul.f32 %v960, %v964
    %v981 = vadd.f32 %v889, %v965
    %v982 = vadd.f32 %v890, %v966
    %v983 = vadd.f32 %v891, %v967
    %v984 = vadd.f32 %v892, %v968
    %v985 = vadd.f32 %v893, %v969
    %v986 = vadd.f32 %v894, %v970
    %v987 = vadd.f32 %v895, %v971
    %v988 = vadd.f32 %v896, %v972
    %v989 = vadd.f32 %v897, %v973
    %v990 = vadd.f32 %v898, %v974
    %v991 = vadd.f32 %v899, %v975
    %v992 = vadd.f32 %v900, %v976
    %v993 = vadd.f32 %v901, %v977
    %v994 = vadd.f32 %v902, %v978
    %v995 = vadd.f32 %v903, %v979
    %v996 = vadd.f32 %v904, %v980
    %v997 = vlaneseq
    %v998 = vshrl.u32 %v997, 7
    %v999 = vsub.s32 2, %v998
    %v1000 = vrot.slane %v810, %v999
    %v1001 = vmul.f32 %v794, %v1000
    %v1002 = vmul.f32 %v795, %v1000
    %v1003 = vmul.f32 %v796, %v1000
    %v1004 = vmul.f32 %v797, %v1000
    %v1005 = vmul.f32 %v798, %v1000
    %v1006 = vmul.f32 %v799, %v1000
    %v1007 = vmul.f32 %v800, %v1000
    %v1008 = vmul.f32 %v801, %v1000
    %v1009 = vmul.f32 %v802, %v1000
    %v1010 = vmul.f32 %v803, %v1000
    %v1011 = vmul.f32 %v804, %v1000
    %v1012 = vmul.f32 %v805, %v1000
    %v1013 = vmul.f32 %v806, %v1000
    %v1014 = vmul.f32 %v807, %v1000
    %v1015 = vmul.f32 %v808, %v1000
    %v1016 = vmul.f32 %v809, %v1000
    %v1017 = vlaneseq
    %v1018 = vshrl.u32 %v1017, 7
    %v1019 = vsub.s32 2, %v1018
    %v1020 = vrot.slane %v811, %v1019
    %v1021 = vadd.f32 %v1001, %v1020
    %v1022 = vadd.f32 %v1002, %v1020
    %v1023 = vadd.f32 %v1003, %v1020
    %v1024 = vadd.f32 %v1004, %v1020
    %v1025 = vadd.f32 %v1005, %v1020
    %v1026 = vadd.f32 %v1006, %v1020
    %v1027 = vadd.f32 %v1007, %v1020
    %v1028 = vadd.f32 %v1008, %v1020
    %v1029 = vadd.f32 %v1009, %v1020
    %v1030 = vadd.f32 %v1010, %v1020
    %v1031 = vadd.f32 %v1011, %v1020
    %v1032 = vadd.f32 %v1012, %v1020
    %v1033 = vadd.f32 %v1013, %v1020
    %v1034 = vadd.f32 %v1014, %v1020
    %v1035 = vadd.f32 %v1015, %v1020
    %v1036 = vadd.f32 %v1016, %v1020
    %v1037 = vmax.f32 %v1021, 0.0
    %v1038 = vmax.f32 %v1022, 0.0
    %v1039 = vmax.f32 %v1023, 0.0
    %v1040 = vmax.f32 %v1024, 0.0
    %v1041 = vmax.f32 %v1025, 0.0
    %v1042 = vmax.f32 %v1026, 0.0
    %v1043 = vmax.f32 %v1027, 0.0
    %v1044 = vmax.f32 %v1028, 0.0
    %v1045 = vmax.f32 %v1029, 0.0
    %v1046 = vmax.f32 %v1030, 0.0
    %v1047 = vmax.f32 %v1031, 0.0
    %v1048 = vmax.f32 %v1032, 0.0
    %v1049 = vmax.f32 %v1033, 0.0
    %v1050 = vmax.f32 %v1034, 0.0
    %v1051 = vmax.f32 %v1035, 0.0
    %v1052 = vmax.f32 %v1036, 0.0
    %v1053 = vlaneseq
    %v1054 = vshrl.u32 %v1053, 7
    %v1055 = vsub.s32 2, %v1054
    %v1056 = vrot.slane %v812, %v1055
    %v1057 = vmul.f32 %v1037, %v1056
    %v1058 = vmul.f32 %v1038, %v1056
    %v1059 = vmul.f32 %v1039, %v1056
    %v1060 = vmul.f32 %v1040, %v1056
    %v1061 = vmul.f32 %v1041, %v1056
    %v1062 = vmul.f32 %v1042, %v1056
    %v1063 = vmul.f32 %v1043, %v1056
    %v1064 = vmul.f32 %v1044, %v1056
    %v1065 = vmul.f32 %v1045, %v1056
    %v1066 = vmul.f32 %v1046, %v1056
    %v1067 = vmul.f32 %v1047, %v1056
    %v1068 = vmul.f32 %v1048, %v1056
    %v1069 = vmul.f32 %v1049, %v1056
    %v1070 = vmul.f32 %v1050, %v1056
    %v1071 = vmul.f32 %v1051, %v1056
    %v1072 = vmul.f32 %v1052, %v1056
    %v1073 = vadd.f32 %v981, %v1057
    %v1074 = vadd.f32 %v982, %v1058
    %v1075 = vadd.f32 %v983, %v1059
    %v1076 = vadd.f32 %v984, %v1060
    %v1077 = vadd.f32 %v985, %v1061
    %v1078 = vadd.f32 %v986, %v1062
    %v1079 = vadd.f32 %v987, %v1063
    %v1080 = vadd.f32 %v988, %v1064
    %v1081 = vadd.f32 %v989, %v1065
    %v1082 = vadd.f32 %v990, %v1066
    %v1083 = vadd.f32 %v991, %v1067
    %v1084 = vadd.f32 %v992, %v1068
    %v1085 = vadd.f32 %v993, %v1069
    %v1086 = vadd.f32 %v994, %v1070
    %v1087 = vadd.f32 %v995, %v1071
    %v1088 = vadd.f32 %v996, %v1072
    %v1089 = vlaneseq
    %v1090 = vshrl.u32 %v1089, 7
    %v1091 = vsub.s32 3, %v1090
    %v1092 = vrot.slane %v810, %v1091
    %v1093 = vmul.f32 %v794, %v1092
    %v1094 = vmul.f32 %v795, %v1092
    %v1095 = vmul.f32 %v796, %v1092
    %v1096 = vmul.f32 %v797, %v1092
    %v1097 = vmul.f32 %v798, %v1092
    %v1098 = vmul.f32 %v799, %v1092
    %v1099 = vmul.f32 %v800, %v1092
    %v1100 = vmul.f32 %v801, %v1092
    %v1101 = vmul.f32 %v802, %v1092
    %v1102 = vmul.f32 %v803, %v1092
    %v1103 = vmul.f32 %v804, %v1092
    %v1104 = vmul.f32 %v805, %v1092
    %v1105 = vmul.f32 %v806, %v1092
    %v1106 = vmul.f32 %v807, %v1092
    %v1107 = vmul.f32 %v808, %v1092
    %v1108 = vmul.f32 %v809, %v1092
    %v1109 = vlaneseq
    %v1110 = vshrl.u32 %v1109, 7
    %v1111 = vsub.s32 3, %v1110
    %v1112 = vrot.slane %v811, %v1111
    %v1113 = vadd.f32 %v1093, %v1112
    %v1114 = vadd.f32 %v1094, %v1112
    %v1115 = vadd.f32 %v1095, %v1112
    %v1116 = vadd.f32 %v1096, %v1112
    %v1117 = vadd.f32 %v1097, %v1112
    %v1118 = vadd.f32 %v1098, %v1112
    %v1119 = vadd.f32 %v1099, %v1112
    %v1120 = vadd.f32 %v1100, %v1112
    %v1121 = vadd.f32 %v1101, %v1112
    %v1122 = vadd.f32 %v1102, %v1112
    %v1123 = vadd.f32 %v1103, %v1112
    %v1124 = vadd.f32 %v1104, %v1112
    %v1125 = vadd.f32 %v1105, %v1112
    %v1126 = vadd.f32 %v1106, %v1112
    %v1127 = vadd.f32 %v1107, %v1112
    %v1128 = vadd.f32 %v1108, %v1112
    %v1129 = vmax.f32 %v1113, 0.0
    %v1130 = vmax.f32 %v1114, 0.0
    %v1131 = vmax.f32 %v1115, 0.0
    %v1132 = vmax.f32 %v1116, 0.0
    %v1133 = vmax.f32 %v1117, 0.0
    %v1134 = vmax.f32 %v1118, 0.0
    %v1135 = vmax.f32 %v1119, 0.0
    %v1136 = vmax.f32 %v1120, 0.0
    %v1137 = vmax.f32 %v1121, 0.0
    %v1138 = vmax.f32 %v1122, 0.0
    %v1139 = vmax.f32 %v1123, 0.0
    %v1140 = vmax.f32 %v1124, 0.0
    %v1141 = vmax.f32 %v1125, 0.0
    %v1142 = vmax.f32 %v1126, 0.0
    %v1143 = vmax.f32 %v1127, 0.0
    %v1144 = vmax.f32 %v1128, 0.0
    %v1145 = vlaneseq
    %v1146 = vshrl.u32 %v1145, 7
    %v1147 = vsub.s32 3, %v1146
    %v1148 = vrot.slane %v812, %v1147
    %v1149 = vmul.f32 %v1129, %v1148
    %v1150 = vmul.f32 %v1130, %v1148
    %v1151 = vmul.f32 %v1131, %v1148
    %v1152 = vmul.f32 %v1132, %v1148
    %v1153 = vmul.f32 %v1133, %v1148
    %v1154 = vmul.f32 %v1134, %v1148
    %v1155 = vmul.f32 %v1135, %v1148
    %v1156 = vmul.f32 %v1136, %v1148
    %v1157 = vmul.f32 %v1137, %v1148
    %v1158 = vmul.f32 %v1138, %v1148
    %v1159 = vmul.f32 %v1139, %v1148
    %v1160 = vmul.f32 %v1140, %v1148
    %v1161 = vmul.f32 %v1141, %v1148
    %v1162 = vmul.f32 %v1142, %v1148
    %v1163 = vmul.f32 %v1143, %v1148
    %v1164 = vmul.f32 %v1144, %v1148
    %v1165 = vadd.f32 %v1073, %v1149
    %v1166 = vadd.f32 %v1074, %v1150
    %v1167 = vadd.f32 %v1075, %v1151
    %v1168 = vadd.f32 %v1076, %v1152
    %v1169 = vadd.f32 %v1077, %v1153
    %v1170 = vadd.f32 %v1078, %v1154
    %v1171 = vadd.f32 %v1079, %v1155
    %v1172 = vadd.f32 %v1080, %v1156
    %v1173 = vadd.f32 %v1081, %v1157
    %v1174 = vadd.f32 %v1082, %v1158
    %v1175 = vadd.f32 %v1083, %v1159
    %v1176 = vadd.f32 %v1084, %v1160
    %v1177 = vadd.f32 %v1085, %v1161
    %v1178 = vadd.f32 %v1086, %v1162
    %v1179 = vadd.f32 %v1087, %v1163
    %v1180 = vadd.f32 %v1088, %v1164
    %v1181 = vld [vmem:[%s6] sm:$0x1]
    %v1183 = vlaneseq
    %v1184 = vshrl.u32 %v1183, 7
    %v1185 = vsub.s32 0, %v1184
    %v1186 = vrot.slane %v1181, %v1185
    %v1188 = vadd.f32 %v1165, %v1186
    %v1189 = vadd.f32 %v1166, %v1186
    %v1190 = vadd.f32 %v1167, %v1186
    %v1191 = vadd.f32 %v1168, %v1186
    %v1192 = vadd.f32 %v1169, %v1186
    %v1193 = vadd.f32 %v1170, %v1186
    %v1194 = vadd.f32 %v1171, %v1186
    %v1195 = vadd.f32 %v1172, %v1186
    %v1196 = vadd.f32 %v1173, %v1186
    %v1197 = vadd.f32 %v1174, %v1186
    %v1198 = vadd.f32 %v1175, %v1186
    %v1199 = vadd.f32 %v1176, %v1186
    %v1200 = vadd.f32 %v1177, %v1186
    %v1201 = vadd.f32 %v1178, %v1186
    %v1202 = vadd.f32 %v1179, %v1186
    %v1203 = vadd.f32 %v1180, %v1186
    %v1204 = vmax.f32 %v1188, 0.0
    %v1205 = vmax.f32 %v1189, 0.0
    %v1206 = vmax.f32 %v1190, 0.0
    %v1207 = vmax.f32 %v1191, 0.0
    %v1208 = vmax.f32 %v1192, 0.0
    %v1209 = vmax.f32 %v1193, 0.0
    %v1210 = vmax.f32 %v1194, 0.0
    %v1211 = vmax.f32 %v1195, 0.0
    %v1212 = vmax.f32 %v1196, 0.0
    %v1213 = vmax.f32 %v1197, 0.0
    %v1214 = vmax.f32 %v1198, 0.0
    %v1215 = vmax.f32 %v1199, 0.0
    %v1216 = vmax.f32 %v1200, 0.0
    %v1217 = vmax.f32 %v1201, 0.0
    %v1218 = vmax.f32 %v1202, 0.0
    %v1219 = vmax.f32 %v1203, 0.0
    %v1220 = vpack.c.bf16 %v1205, %v1204
    %v1221 = vpack.c.bf16 %v1207, %v1206
    %v1222 = vpack.c.bf16 %v1209, %v1208
    %v1223 = vpack.c.bf16 %v1211, %v1210
    %v1224 = vpack.c.bf16 %v1213, %v1212
    %v1225 = vpack.c.bf16 %v1215, %v1214
    %v1226 = vpack.c.bf16 %v1217, %v1216
    %v1227 = vpack.c.bf16 %v1219, %v1218
    %v1228 = vld [vmem:[#allocation11] sm:$0xff]
    %v1229 = vld [vmem:[#allocation11 + $0x8] sm:$0xf]
    %v1230 = vld [vmem:[#allocation11 + $0xc] sm:$0xff]
    %v1231 = vld [vmem:[#allocation11 + $0x14] sm:$0xf]
    %v1232 = vld [vmem:[#allocation11 + $0x18] sm:$0xff]
    %v1233 = vld [vmem:[#allocation11 + $0x20] sm:$0xf]
    %v1234 = vld [vmem:[#allocation11 + $0x24] sm:$0xff]
    %v1235 = vld [vmem:[#allocation11 + $0x2c] sm:$0xf]
    %v1236 = vld [vmem:[#allocation11 + $0x30] sm:$0xff]
    %v1237 = vld [vmem:[#allocation11 + $0x38] sm:$0xf]
    %v1238 = vld [vmem:[#allocation11 + $0x3c] sm:$0xff]
    %v1239 = vld [vmem:[#allocation11 + $0x44] sm:$0xf]
    %v1240 = vld [vmem:[#allocation11 + $0x48] sm:$0xff]
    %v1241 = vld [vmem:[#allocation11 + $0x50] sm:$0xf]
    %v1242 = vld [vmem:[#allocation11 + $0x54] sm:$0xff]
    %v1243 = vld [vmem:[#allocation11 + $0x5c] sm:$0xf]
    %v1244 = vld [vmem:[#allocation11 + $0x60] sm:$0xff]
    %v1245 = vld [vmem:[#allocation11 + $0x68] sm:$0xf]
    %v1246 = vld [vmem:[#allocation11 + $0x6c] sm:$0xff]
    %v1247 = vld [vmem:[#allocation11 + $0x74] sm:$0xf]
    %v1248 = vld [vmem:[#allocation11 + $0x78] sm:$0xff]
    %v1249 = vld [vmem:[#allocation11 + $0x80] sm:$0xf]
    %v1250 = vld [vmem:[#allocation11 + $0x84] sm:$0xff]
    %v1251 = vld [vmem:[#allocation11 + $0x8c] sm:$0xf]
    %v1252 = vld [vmem:[#allocation11 + $0x90] sm:$0xff]
    %v1253 = vld [vmem:[#allocation11 + $0x98] sm:$0xf]
    %v1254 = vld [vmem:[#allocation11 + $0x9c] sm:$0xff]
    %v1255 = vld [vmem:[#allocation11 + $0xa4] sm:$0xf]
    %v1256 = vld [vmem:[#allocation11 + $0xa8] sm:$0xff]
    %v1257 = vld [vmem:[#allocation11 + $0xb0] sm:$0xf]
    %v1258 = vld [vmem:[#allocation11 + $0xb4] sm:$0xff]
    %v1259 = vld [vmem:[#allocation11 + $0xbc] sm:$0xf]
    %v1260 = vld [vmem:[%s8] sm:$0x7]
    %v1262 = vlaneseq
    %v1263 = vshrl.u32 %v1262, 7
    %v1264 = vsub.s32 0, %v1263
    %v1265 = vrot.slane %v1260, %v1264
    %v1266 = vlaneseq
    %v1267 = vshrl.u32 %v1266, 7
    %v1268 = vsub.s32 1, %v1267
    %v1269 = vrot.slane %v1260, %v1268
    %v1270 = vlaneseq
    %v1271 = vshrl.u32 %v1270, 7
    %v1272 = vsub.s32 2, %v1271
    %v1273 = vrot.slane %v1260, %v1272
    %v1309 = vunpack.c.l.b16 %v1228
    %v1310 = vunpack.c.h.b16 %v1228
    %v1311 = vunpack.c.l.b16 %v1229
    %v1312 = vunpack.c.l.b16 %v1230
    %v1313 = vunpack.c.h.b16 %v1230
    %v1314 = vunpack.c.l.b16 %v1231
    %v1315 = vunpack.c.l.b16 %v1232
    %v1316 = vunpack.c.h.b16 %v1232
    %v1317 = vunpack.c.l.b16 %v1233
    %v1318 = vunpack.c.l.b16 %v1234
    %v1319 = vunpack.c.h.b16 %v1234
    %v1320 = vunpack.c.l.b16 %v1235
    %v1321 = vunpack.c.l.b16 %v1236
    %v1322 = vunpack.c.h.b16 %v1236
    %v1323 = vunpack.c.l.b16 %v1237
    %v1324 = vunpack.c.l.b16 %v1238
    %v1325 = vunpack.c.h.b16 %v1238
    %v1326 = vunpack.c.l.b16 %v1239
    %v1327 = vunpack.c.l.b16 %v1240
    %v1328 = vunpack.c.h.b16 %v1240
    %v1329 = vunpack.c.l.b16 %v1241
    %v1330 = vunpack.c.l.b16 %v1242
    %v1331 = vunpack.c.h.b16 %v1242
    %v1332 = vunpack.c.l.b16 %v1243
    %v1333 = vunpack.c.l.b16 %v1244
    %v1334 = vunpack.c.h.b16 %v1244
    %v1335 = vunpack.c.l.b16 %v1245
    %v1336 = vunpack.c.l.b16 %v1246
    %v1337 = vunpack.c.h.b16 %v1246
    %v1338 = vunpack.c.l.b16 %v1247
    %v1339 = vunpack.c.l.b16 %v1248
    %v1340 = vunpack.c.h.b16 %v1248
    %v1341 = vunpack.c.l.b16 %v1249
    %v1342 = vunpack.c.l.b16 %v1250
    %v1343 = vunpack.c.h.b16 %v1250
    %v1344 = vunpack.c.l.b16 %v1251
    %v1345 = vunpack.c.l.b16 %v1252
    %v1346 = vunpack.c.h.b16 %v1252
    %v1347 = vunpack.c.l.b16 %v1253
    %v1348 = vunpack.c.l.b16 %v1254
    %v1349 = vunpack.c.h.b16 %v1254
    %v1350 = vunpack.c.l.b16 %v1255
    %v1351 = vunpack.c.l.b16 %v1256
    %v1352 = vunpack.c.h.b16 %v1256
    %v1353 = vunpack.c.l.b16 %v1257
    %v1354 = vunpack.c.l.b16 %v1258
    %v1355 = vunpack.c.h.b16 %v1258
    %v1356 = vunpack.c.l.b16 %v1259
    %v1357 = vpack.c.b16 %v1312, %v1309
    %v1358 = vpack.c.b16 %v1313, %v1310
    %v1359 = vpack.c.b16 %v1314, %v1311
    %v1360 = vpack.c.b16 %v1318, %v1315
    %v1361 = vpack.c.b16 %v1319, %v1316
    %v1362 = vpack.c.b16 %v1320, %v1317
    %v1363 = vpack.c.b16 %v1324, %v1321
    %v1364 = vpack.c.b16 %v1325, %v1322
    %v1365 = vpack.c.b16 %v1326, %v1323
    %v1366 = vpack.c.b16 %v1330, %v1327
    %v1367 = vpack.c.b16 %v1331, %v1328
    %v1368 = vpack.c.b16 %v1332, %v1329
    %v1369 = vpack.c.b16 %v1336, %v1333
    %v1370 = vpack.c.b16 %v1337, %v1334
    %v1371 = vpack.c.b16 %v1338, %v1335
    %v1372 = vpack.c.b16 %v1342, %v1339
    %v1373 = vpack.c.b16 %v1343, %v1340
    %v1374 = vpack.c.b16 %v1344, %v1341
    %v1375 = vpack.c.b16 %v1348, %v1345
    %v1376 = vpack.c.b16 %v1349, %v1346
    %v1377 = vpack.c.b16 %v1350, %v1347
    %v1378 = vpack.c.b16 %v1354, %v1351
    %v1379 = vpack.c.b16 %v1355, %v1352
    %v1380 = vpack.c.b16 %v1356, %v1353
    %1405 = vmatprep.subr.bf16.mxu0 %v1379
    %1406 = vmatpush1.bf16.msra.mxu0 %v1378
    %1407 = vmatprep.subr.bf16.mxu0 %v1376
    %1408 = vmatpush1.bf16.msra.mxu0 %v1375
    %1409 = vmatprep.subr.bf16.mxu0 %v1373
    %1410 = vmatpush1.bf16.msra.mxu0 %v1372
    %1411 = vmatprep.subr.bf16.mxu0 %v1370
    %1412 = vmatpush1.bf16.msra.mxu0 %v1369
    %1413 = vmatprep.subr.bf16.mxu0 %v1367
    %1414 = vmatpush1.bf16.msra.mxu0 %v1366
    %1415 = vmatprep.subr.bf16.mxu0 %v1364
    %1416 = vmatpush1.bf16.msra.mxu0 %v1363
    %1417 = vmatprep.subr.bf16.mxu0 %v1361
    %1418 = vmatpush1.bf16.msra.mxu0 %v1360
    %1419 = vmatprep.subr.bf16.mxu0 %v1358
    %1420 = vmatpush1.bf16.msra.mxu0 %v1357
    %1421 = vmatprep.subr.bf16.mxu0 0
    %1422 = vmatpush2.bf16.msra.mxu0 0
    %1423 = vmatprep.subr.bf16.mxu0 0
    %1424 = vmatpush2.bf16.msra.mxu0 0
    %1425 = vmatprep.subr.bf16.mxu0 0
    %1426 = vmatpush2.bf16.msra.mxu0 0
    %1427 = vmatprep.subr.bf16.mxu0 0
    %1428 = vmatpush2.bf16.msra.mxu0 0
    %1429 = vmatprep.subr.bf16.mxu0 0
    %1430 = vmatpush2.bf16.msra.mxu0 0
    %1431 = vmatprep.subr.bf16.mxu0 0
    %1432 = vmatpush2.bf16.msra.mxu0 0
    %1433 = vmatprep.subr.bf16.mxu0 0
    %1434 = vmatpush2.bf16.msra.mxu0 0
    %1435 = vmatprep.subr.bf16.mxu0 0
    %1436 = vmatpush2.bf16.msra.mxu0 0
    %1437 = vmatprep.mubr.bf16.mxu0 0
    %1438 = vmatmul.mubr.bf16.gmra.mxu0 %v1220
    %v1439 = vpop.f32.mrf.mxu0
    %v1440 = vadd.f32 %v1265, %v1439
    %v1441 = vpop.f32.mrf.mxu0
    %v1442 = vadd.f32 %v1269, %v1441
    %v1443 = vpop.f32.mrf.mxu0
    %v1444 = vadd.f32 %v1265, %v1443
    %v1445 = vpop.f32.mrf.mxu0
    %v1446 = vadd.f32 %v1269, %v1445
    %1447 = vmatprep.mubr.bf16.mxu0 0
    %1448 = vmatmul.mubr.bf16.gmra.mxu0 %v1221
    %v1449 = vpop.f32.mrf.mxu0
    %v1450 = vadd.f32 %v1265, %v1449
    %v1451 = vpop.f32.mrf.mxu0
    %v1452 = vadd.f32 %v1269, %v1451
    %v1453 = vpop.f32.mrf.mxu0
    %v1454 = vadd.f32 %v1265, %v1453
    %v1455 = vpop.f32.mrf.mxu0
    %v1456 = vadd.f32 %v1269, %v1455
    %1457 = vmatprep.mubr.bf16.mxu0 0
    %1458 = vmatmul.mubr.bf16.gmra.mxu0 %v1222
    %v1459 = vpop.f32.mrf.mxu0
    %v1460 = vadd.f32 %v1265, %v1459
    %v1461 = vpop.f32.mrf.mxu0
    %v1462 = vadd.f32 %v1269, %v1461
    %v1463 = vpop.f32.mrf.mxu0
    %v1464 = vadd.f32 %v1265, %v1463
    %v1465 = vpop.f32.mrf.mxu0
    %v1466 = vadd.f32 %v1269, %v1465
    %1467 = vmatprep.mubr.bf16.mxu0 0
    %1468 = vmatmul.mubr.bf16.gmra.mxu0 %v1223
    %v1469 = vpop.f32.mrf.mxu0
    %v1470 = vadd.f32 %v1265, %v1469
    %v1471 = vpop.f32.mrf.mxu0
    %v1472 = vadd.f32 %v1269, %v1471
    %v1473 = vpop.f32.mrf.mxu0
    %v1474 = vadd.f32 %v1265, %v1473
    %v1475 = vpop.f32.mrf.mxu0
    %v1476 = vadd.f32 %v1269, %v1475
    %1477 = vmatprep.mubr.bf16.mxu0 0
    %1478 = vmatmul.mubr.bf16.gmra.mxu0 %v1224
    %v1479 = vpop.f32.mrf.mxu0
    %v1480 = vadd.f32 %v1265, %v1479
    %v1481 = vpop.f32.mrf.mxu0
    %v1482 = vadd.f32 %v1269, %v1481
    %v1483 = vpop.f32.mrf.mxu0
    %v1484 = vadd.f32 %v1265, %v1483
    %v1485 = vpop.f32.mrf.mxu0
    %v1486 = vadd.f32 %v1269, %v1485
    %1487 = vmatprep.mubr.bf16.mxu0 0
    %1488 = vmatmul.mubr.bf16.gmra.mxu0 %v1225
    %v1489 = vpop.f32.mrf.mxu0
    %v1490 = vadd.f32 %v1265, %v1489
    %v1491 = vpop.f32.mrf.mxu0
    %v1492 = vadd.f32 %v1269, %v1491
    %v1493 = vpop.f32.mrf.mxu0
    %v1494 = vadd.f32 %v1265, %v1493
    %v1495 = vpop.f32.mrf.mxu0
    %v1496 = vadd.f32 %v1269, %v1495
    %1497 = vmatprep.mubr.bf16.mxu0 0
    %1498 = vmatmul.mubr.bf16.gmra.mxu0 %v1226
    %v1499 = vpop.f32.mrf.mxu0
    %v1500 = vadd.f32 %v1265, %v1499
    %v1501 = vpop.f32.mrf.mxu0
    %v1502 = vadd.f32 %v1269, %v1501
    %v1503 = vpop.f32.mrf.mxu0
    %v1504 = vadd.f32 %v1265, %v1503
    %v1505 = vpop.f32.mrf.mxu0
    %v1506 = vadd.f32 %v1269, %v1505
    %1507 = vmatprep.mubr.bf16.mxu0 0
    %1508 = vmatmul.mubr.bf16.gmra.mxu0 %v1227
    %v1509 = vpop.f32.mrf.mxu0
    %v1510 = vadd.f32 %v1265, %v1509
    %v1511 = vpop.f32.mrf.mxu0
    %v1512 = vadd.f32 %v1269, %v1511
    %v1513 = vpop.f32.mrf.mxu0
    %v1514 = vadd.f32 %v1265, %v1513
    %v1515 = vpop.f32.mrf.mxu0
    %v1516 = vadd.f32 %v1269, %v1515
    %1517 = vdwg.mxu0
    %1518 = vmatprep.subr.bf16.mxu0 0
    %1519 = vmatpush1.bf16.msra.mxu0 %v1380
    %1520 = vmatprep.subr.bf16.mxu0 0
    %1521 = vmatpush1.bf16.msra.mxu0 %v1377
    %1522 = vmatprep.subr.bf16.mxu0 0
    %1523 = vmatpush1.bf16.msra.mxu0 %v1374
    %1524 = vmatprep.subr.bf16.mxu0 0
    %1525 = vmatpush1.bf16.msra.mxu0 %v1371
    %1526 = vmatprep.subr.bf16.mxu0 0
    %1527 = vmatpush1.bf16.msra.mxu0 %v1368
    %1528 = vmatprep.subr.bf16.mxu0 0
    %1529 = vmatpush1.bf16.msra.mxu0 %v1365
    %1530 = vmatprep.subr.bf16.mxu0 0
    %1531 = vmatpush1.bf16.msra.mxu0 %v1362
    %1532 = vmatprep.subr.bf16.mxu0 0
    %1533 = vmatpush1.bf16.msra.mxu0 %v1359
    %1534 = vmatprep.subr.bf16.mxu0 0
    %1535 = vmatpush2.bf16.msra.mxu0 0
    %1536 = vmatprep.subr.bf16.mxu0 0
    %1537 = vmatpush2.bf16.msra.mxu0 0
    %1538 = vmatprep.subr.bf16.mxu0 0
    %1539 = vmatpush2.bf16.msra.mxu0 0
    %1540 = vmatprep.subr.bf16.mxu0 0
    %1541 = vmatpush2.bf16.msra.mxu0 0
    %1542 = vmatprep.subr.bf16.mxu0 0
    %1543 = vmatpush2.bf16.msra.mxu0 0
    %1544 = vmatprep.subr.bf16.mxu0 0
    %1545 = vmatpush2.bf16.msra.mxu0 0
    %1546 = vmatprep.subr.bf16.mxu0 0
    %1547 = vmatpush2.bf16.msra.mxu0 0
    %1548 = vmatprep.subr.bf16.mxu0 0
    %1549 = vmatpush2.bf16.msra.mxu0 0
    %1550 = vmatprep.mubr.bf16.mxu0 0
    %1551 = vmatmul.mubr.bf16.gmra.mxu0 %v1220
    %v1552 = vpop.f32.mrf.mxu0
    %v1553 = vadd.f32 %v1273, %v1552
    %v1554 = vpop.f32.mrf.mxu0
    %v1555 = vpop.f32.mrf.mxu0
    %v1556 = vadd.f32 %v1273, %v1555
    %v1557 = vpop.f32.mrf.mxu0
    %1558 = vmatprep.mubr.bf16.mxu0 0
    %1559 = vmatmul.mubr.bf16.gmra.mxu0 %v1221
    %v1560 = vpop.f32.mrf.mxu0
    %v1561 = vadd.f32 %v1273, %v1560
    %v1562 = vpop.f32.mrf.mxu0
    %v1563 = vpop.f32.mrf.mxu0
    %v1564 = vadd.f32 %v1273, %v1563
    %v1565 = vpop.f32.mrf.mxu0
    %1566 = vmatprep.mubr.bf16.mxu0 0
    %1567 = vmatmul.mubr.bf16.gmra.mxu0 %v1222
    %v1568 = vpop.f32.mrf.mxu0
    %v1569 = vadd.f32 %v1273, %v1568
    %v1570 = vpop.f32.mrf.mxu0
    %v1571 = vpop.f32.mrf.mxu0
    %v1572 = vadd.f32 %v1273, %v1571
    %v1573 = vpop.f32.mrf.mxu0
    %1574 = vmatprep.mubr.bf16.mxu0 0
    %1575 = vmatmul.mubr.bf16.gmra.mxu0 %v1223
    %v1576 = vpop.f32.mrf.mxu0
    %v1577 = vadd.f32 %v1273, %v1576
    %v1578 = vpop.f32.mrf.mxu0
    %v1579 = vpop.f32.mrf.mxu0
    %v1580 = vadd.f32 %v1273, %v1579
    %v1581 = vpop.f32.mrf.mxu0
    %1582 = vmatprep.mubr.bf16.mxu0 0
    %1583 = vmatmul.mubr.bf16.gmra.mxu0 %v1224
    %v1584 = vpop.f32.mrf.mxu0
    %v1585 = vadd.f32 %v1273, %v1584
    %v1586 = vpop.f32.mrf.mxu0
    %v1587 = vpop.f32.mrf.mxu0
    %v1588 = vadd.f32 %v1273, %v1587
    %v1589 = vpop.f32.mrf.mxu0
    %1590 = vmatprep.mubr.bf16.mxu0 0
    %1591 = vmatmul.mubr.bf16.gmra.mxu0 %v1225
    %v1592 = vpop.f32.mrf.mxu0
    %v1593 = vadd.f32 %v1273, %v1592
    %v1594 = vpop.f32.mrf.mxu0
    %v1595 = vpop.f32.mrf.mxu0
    %v1596 = vadd.f32 %v1273, %v1595
    %v1597 = vpop.f32.mrf.mxu0
    %1598 = vmatprep.mubr.bf16.mxu0 0
    %1599 = vmatmul.mubr.bf16.gmra.mxu0 %v1226
    %v1600 = vpop.f32.mrf.mxu0
    %v1601 = vadd.f32 %v1273, %v1600
    %v1602 = vpop.f32.mrf.mxu0
    %v1603 = vpop.f32.mrf.mxu0
    %v1604 = vadd.f32 %v1273, %v1603
    %v1605 = vpop.f32.mrf.mxu0
    %1606 = vmatprep.mubr.bf16.mxu0 0
    %1607 = vmatmul.mubr.bf16.gmra.mxu0 %v1227
    %v1608 = vpop.f32.mrf.mxu0
    %v1609 = vadd.f32 %v1273, %v1608
    %v1610 = vpop.f32.mrf.mxu0
    %v1611 = vpop.f32.mrf.mxu0
    %v1612 = vadd.f32 %v1273, %v1611
    %v1613 = vpop.f32.mrf.mxu0
    %1614 = vdwg.mxu0
    %v1615 = vadd.f32 %v1440, %v528
    %v1616 = vadd.f32 %v1444, %v532
    %v1617 = vadd.f32 %v1450, %v538
    %v1618 = vadd.f32 %v1454, %v542
    %v1619 = vadd.f32 %v1460, %v548
    %v1620 = vadd.f32 %v1464, %v552
    %v1621 = vadd.f32 %v1470, %v558
    %v1622 = vadd.f32 %v1474, %v562
    %v1623 = vadd.f32 %v1480, %v568
    %v1624 = vadd.f32 %v1484, %v572
    %v1625 = vadd.f32 %v1490, %v578
    %v1626 = vadd.f32 %v1494, %v582
    %v1627 = vadd.f32 %v1500, %v588
    %v1628 = vadd.f32 %v1504, %v592
    %v1629 = vadd.f32 %v1510, %v598
    %v1630 = vadd.f32 %v1514, %v602
    %v1631 = vtanh.pop %v1615
    %v1632 = vtanh.pop %v1616
    %v1633 = vtanh.pop %v1617
    %v1634 = vtanh.pop %v1618
    %v1635 = vtanh.pop %v1619
    %v1636 = vtanh.pop %v1620
    %v1637 = vtanh.pop %v1621
    %v1638 = vtanh.pop %v1622
    %v1639 = vtanh.pop %v1623
    %v1640 = vtanh.pop %v1624
    %v1641 = vtanh.pop %v1625
    %v1642 = vtanh.pop %v1626
    %v1643 = vtanh.pop %v1627
    %v1644 = vtanh.pop %v1628
    %v1645 = vtanh.pop %v1629
    %v1646 = vtanh.pop %v1630
    %v1647 = vadd.f32 %v1631, 1.0
    %v1648 = vadd.f32 %v1632, 1.0
    %v1649 = vadd.f32 %v1633, 1.0
    %v1650 = vadd.f32 %v1634, 1.0
    %v1651 = vadd.f32 %v1635, 1.0
    %v1652 = vadd.f32 %v1636, 1.0
    %v1653 = vadd.f32 %v1637, 1.0
    %v1654 = vadd.f32 %v1638, 1.0
    %v1655 = vadd.f32 %v1639, 1.0
    %v1656 = vadd.f32 %v1640, 1.0
    %v1657 = vadd.f32 %v1641, 1.0
    %v1658 = vadd.f32 %v1642, 1.0
    %v1659 = vadd.f32 %v1643, 1.0
    %v1660 = vadd.f32 %v1644, 1.0
    %v1661 = vadd.f32 %v1645, 1.0
    %v1662 = vadd.f32 %v1646, 1.0
    %v1663 = vadd.f32 %v1442, %v530
    %v1664 = vadd.f32 %v1446, %v534
    %v1665 = vadd.f32 %v1452, %v540
    %v1666 = vadd.f32 %v1456, %v544
    %v1667 = vadd.f32 %v1462, %v550
    %v1668 = vadd.f32 %v1466, %v554
    %v1669 = vadd.f32 %v1472, %v560
    %v1670 = vadd.f32 %v1476, %v564
    %v1671 = vadd.f32 %v1482, %v570
    %v1672 = vadd.f32 %v1486, %v574
    %v1673 = vadd.f32 %v1492, %v580
    %v1674 = vadd.f32 %v1496, %v584
    %v1675 = vadd.f32 %v1502, %v590
    %v1676 = vadd.f32 %v1506, %v594
    %v1677 = vadd.f32 %v1512, %v600
    %v1678 = vadd.f32 %v1516, %v604
    %v1679 = vmul.f32 %v1663, 0.5
    %v1680 = vmul.f32 %v1664, 0.5
    %v1681 = vmul.f32 %v1665, 0.5
    %v1682 = vmul.f32 %v1666, 0.5
    %v1683 = vmul.f32 %v1667, 0.5
    %v1684 = vmul.f32 %v1668, 0.5
    %v1685 = vmul.f32 %v1669, 0.5
    %v1686 = vmul.f32 %v1670, 0.5
    %v1687 = vmul.f32 %v1671, 0.5
    %v1688 = vmul.f32 %v1672, 0.5
    %v1689 = vmul.f32 %v1673, 0.5
    %v1690 = vmul.f32 %v1674, 0.5
    %v1691 = vmul.f32 %v1675, 0.5
    %v1692 = vmul.f32 %v1676, 0.5
    %v1693 = vmul.f32 %v1677, 0.5
    %v1694 = vmul.f32 %v1678, 0.5
    %v1695 = vtanh.pop %v1679
    %v1696 = vtanh.pop %v1680
    %v1697 = vtanh.pop %v1681
    %v1698 = vtanh.pop %v1682
    %v1699 = vtanh.pop %v1683
    %v1700 = vtanh.pop %v1684
    %v1701 = vtanh.pop %v1685
    %v1702 = vtanh.pop %v1686
    %v1703 = vtanh.pop %v1687
    %v1704 = vtanh.pop %v1688
    %v1705 = vtanh.pop %v1689
    %v1706 = vtanh.pop %v1690
    %v1707 = vtanh.pop %v1691
    %v1708 = vtanh.pop %v1692
    %v1709 = vtanh.pop %v1693
    %v1710 = vtanh.pop %v1694
    %v1711 = vadd.f32 %v1695, 1.0
    %v1712 = vadd.f32 %v1696, 1.0
    %v1713 = vadd.f32 %v1697, 1.0
    %v1714 = vadd.f32 %v1698, 1.0
    %v1715 = vadd.f32 %v1699, 1.0
    %v1716 = vadd.f32 %v1700, 1.0
    %v1717 = vadd.f32 %v1701, 1.0
    %v1718 = vadd.f32 %v1702, 1.0
    %v1719 = vadd.f32 %v1703, 1.0
    %v1720 = vadd.f32 %v1704, 1.0
    %v1721 = vadd.f32 %v1705, 1.0
    %v1722 = vadd.f32 %v1706, 1.0
    %v1723 = vadd.f32 %v1707, 1.0
    %v1724 = vadd.f32 %v1708, 1.0
    %v1725 = vadd.f32 %v1709, 1.0
    %v1726 = vadd.f32 %v1710, 1.0
    %v1727 = vmul.f32 %v1711, 0.5
    %v1728 = vmul.f32 %v1712, 0.5
    %v1729 = vmul.f32 %v1713, 0.5
    %v1730 = vmul.f32 %v1714, 0.5
    %v1731 = vmul.f32 %v1715, 0.5
    %v1732 = vmul.f32 %v1716, 0.5
    %v1733 = vmul.f32 %v1717, 0.5
    %v1734 = vmul.f32 %v1718, 0.5
    %v1735 = vmul.f32 %v1719, 0.5
    %v1736 = vmul.f32 %v1720, 0.5
    %v1737 = vmul.f32 %v1721, 0.5
    %v1738 = vmul.f32 %v1722, 0.5
    %v1739 = vmul.f32 %v1723, 0.5
    %v1740 = vmul.f32 %v1724, 0.5
    %v1741 = vmul.f32 %v1725, 0.5
    %v1742 = vmul.f32 %v1726, 0.5
    %v1743 = vmul.f32 %v1647, %v124
    %v1744 = vmul.f32 %v1648, %v125
    %v1745 = vmul.f32 %v1649, %v126
    %v1746 = vmul.f32 %v1650, %v127
    %v1747 = vmul.f32 %v1651, %v128
    %v1748 = vmul.f32 %v1652, %v129
    %v1749 = vmul.f32 %v1653, %v130
    %v1750 = vmul.f32 %v1654, %v131
    %v1751 = vmul.f32 %v1655, %v132
    %v1752 = vmul.f32 %v1656, %v133
    %v1753 = vmul.f32 %v1657, %v134
    %v1754 = vmul.f32 %v1658, %v135
    %v1755 = vmul.f32 %v1659, %v136
    %v1756 = vmul.f32 %v1660, %v137
    %v1757 = vmul.f32 %v1661, %v138
    %v1758 = vmul.f32 %v1662, %v139
    %v1759 = vadd.f32 %v1553, %v1743
    %v1760 = vadd.f32 %v1556, %v1744
    %v1761 = vadd.f32 %v1561, %v1745
    %v1762 = vadd.f32 %v1564, %v1746
    %v1763 = vadd.f32 %v1569, %v1747
    %v1764 = vadd.f32 %v1572, %v1748
    %v1765 = vadd.f32 %v1577, %v1749
    %v1766 = vadd.f32 %v1580, %v1750
    %v1767 = vadd.f32 %v1585, %v1751
    %v1768 = vadd.f32 %v1588, %v1752
    %v1769 = vadd.f32 %v1593, %v1753
    %v1770 = vadd.f32 %v1596, %v1754
    %v1771 = vadd.f32 %v1601, %v1755
    %v1772 = vadd.f32 %v1604, %v1756
    %v1773 = vadd.f32 %v1609, %v1757
    %v1774 = vadd.f32 %v1612, %v1758
    %v1775 = vtanh.pop %v1759
    %v1776 = vtanh.pop %v1760
    %v1777 = vtanh.pop %v1761
    %v1778 = vtanh.pop %v1762
    %v1779 = vtanh.pop %v1763
    %v1780 = vtanh.pop %v1764
    %v1781 = vtanh.pop %v1765
    %v1782 = vtanh.pop %v1766
    %v1783 = vtanh.pop %v1767
    %v1784 = vtanh.pop %v1768
    %v1785 = vtanh.pop %v1769
    %v1786 = vtanh.pop %v1770
    %v1787 = vtanh.pop %v1771
    %v1788 = vtanh.pop %v1772
    %v1789 = vtanh.pop %v1773
    %v1790 = vtanh.pop %v1774
    %v1791 = vsub.f32 %v124, %v1775
    %v1792 = vsub.f32 %v125, %v1776
    %v1793 = vsub.f32 %v126, %v1777
    %v1794 = vsub.f32 %v127, %v1778
    %v1795 = vsub.f32 %v128, %v1779
    %v1796 = vsub.f32 %v129, %v1780
    %v1797 = vsub.f32 %v130, %v1781
    %v1798 = vsub.f32 %v131, %v1782
    %v1799 = vsub.f32 %v132, %v1783
    %v1800 = vsub.f32 %v133, %v1784
    %v1801 = vsub.f32 %v134, %v1785
    %v1802 = vsub.f32 %v135, %v1786
    %v1803 = vsub.f32 %v136, %v1787
    %v1804 = vsub.f32 %v137, %v1788
    %v1805 = vsub.f32 %v138, %v1789
    %v1806 = vsub.f32 %v139, %v1790
    %v1807 = vmul.f32 %v1727, %v1791
    %v1808 = vmul.f32 %v1728, %v1792
    %v1809 = vmul.f32 %v1729, %v1793
    %v1810 = vmul.f32 %v1730, %v1794
    %v1811 = vmul.f32 %v1731, %v1795
    %v1812 = vmul.f32 %v1732, %v1796
    %v1813 = vmul.f32 %v1733, %v1797
    %v1814 = vmul.f32 %v1734, %v1798
    %v1815 = vmul.f32 %v1735, %v1799
    %v1816 = vmul.f32 %v1736, %v1800
    %v1817 = vmul.f32 %v1737, %v1801
    %v1818 = vmul.f32 %v1738, %v1802
    %v1819 = vmul.f32 %v1739, %v1803
    %v1820 = vmul.f32 %v1740, %v1804
    %v1821 = vmul.f32 %v1741, %v1805
    %v1822 = vmul.f32 %v1742, %v1806
    %v1823 = vadd.f32 %v1775, %v1807
    %v1824 = vadd.f32 %v1776, %v1808
    %v1825 = vadd.f32 %v1777, %v1809
    %v1826 = vadd.f32 %v1778, %v1810
    %v1827 = vadd.f32 %v1779, %v1811
    %v1828 = vadd.f32 %v1780, %v1812
    %v1829 = vadd.f32 %v1781, %v1813
    %v1830 = vadd.f32 %v1782, %v1814
    %v1831 = vadd.f32 %v1783, %v1815
    %v1832 = vadd.f32 %v1784, %v1816
    %v1833 = vadd.f32 %v1785, %v1817
    %v1834 = vadd.f32 %v1786, %v1818
    %v1835 = vadd.f32 %v1787, %v1819
    %v1836 = vadd.f32 %v1788, %v1820
    %v1837 = vadd.f32 %v1789, %v1821
    %v1838 = vadd.f32 %v1790, %v1822
    %v1839 = vld [vmem:[%s9] sm:$0x1]
    %v1841 = vlaneseq
    %v1842 = vshrl.u32 %v1841, 7
    %v1843 = vsub.s32 0, %v1842
    %v1844 = vrot.slane %v1839, %v1843
    %v1846 = vmul.f32 %v1823, %v1844
    %v1847 = vmul.f32 %v1824, %v1844
    %v1848 = vmul.f32 %v1825, %v1844
    %v1849 = vmul.f32 %v1826, %v1844
    %v1850 = vmul.f32 %v1827, %v1844
    %v1851 = vmul.f32 %v1828, %v1844
    %v1852 = vmul.f32 %v1829, %v1844
    %v1853 = vmul.f32 %v1830, %v1844
    %v1854 = vmul.f32 %v1831, %v1844
    %v1855 = vmul.f32 %v1832, %v1844
    %v1856 = vmul.f32 %v1833, %v1844
    %v1857 = vmul.f32 %v1834, %v1844
    %v1858 = vmul.f32 %v1835, %v1844
    %v1859 = vmul.f32 %v1836, %v1844
    %v1860 = vmul.f32 %v1837, %v1844
    %v1861 = vmul.f32 %v1838, %v1844
    %v1862 = vld [vmem:[%s10] sm:$0x1]
    %v1864 = vlaneseq
    %v1865 = vshrl.u32 %v1864, 7
    %v1866 = vsub.s32 0, %v1865
    %v1867 = vrot.slane %v1862, %v1866
    %v1869 = vmul.f32 %v124, %v1867
    %v1870 = vmul.f32 %v125, %v1867
    %v1871 = vmul.f32 %v126, %v1867
    %v1872 = vmul.f32 %v127, %v1867
    %v1873 = vmul.f32 %v128, %v1867
    %v1874 = vmul.f32 %v129, %v1867
    %v1875 = vmul.f32 %v130, %v1867
    %v1876 = vmul.f32 %v131, %v1867
    %v1877 = vmul.f32 %v132, %v1867
    %v1878 = vmul.f32 %v133, %v1867
    %v1879 = vmul.f32 %v134, %v1867
    %v1880 = vmul.f32 %v135, %v1867
    %v1881 = vmul.f32 %v136, %v1867
    %v1882 = vmul.f32 %v137, %v1867
    %v1883 = vmul.f32 %v138, %v1867
    %v1884 = vmul.f32 %v139, %v1867
    %v1885 = vadd.f32 %v1846, %v1869
    %v1886 = vadd.f32 %v1847, %v1870
    %v1887 = vadd.f32 %v1848, %v1871
    %v1888 = vadd.f32 %v1849, %v1872
    %v1889 = vadd.f32 %v1850, %v1873
    %v1890 = vadd.f32 %v1851, %v1874
    %v1891 = vadd.f32 %v1852, %v1875
    %v1892 = vadd.f32 %v1853, %v1876
    %v1893 = vadd.f32 %v1854, %v1877
    %v1894 = vadd.f32 %v1855, %v1878
    %v1895 = vadd.f32 %v1856, %v1879
    %v1896 = vadd.f32 %v1857, %v1880
    %v1897 = vadd.f32 %v1858, %v1881
    %v1898 = vadd.f32 %v1859, %v1882
    %v1899 = vadd.f32 %v1860, %v1883
    %v1900 = vadd.f32 %v1861, %v1884
    %v1901 = vmul.f32 %v1885, %v1885
    %v1902 = vmul.f32 %v1886, %v1886
    %v1903 = vmul.f32 %v1887, %v1887
    %v1904 = vmul.f32 %v1888, %v1888
    %v1905 = vmul.f32 %v1889, %v1889
    %v1906 = vmul.f32 %v1890, %v1890
    %v1907 = vmul.f32 %v1891, %v1891
    %v1908 = vmul.f32 %v1892, %v1892
    %v1909 = vmul.f32 %v1893, %v1893
    %v1910 = vmul.f32 %v1894, %v1894
    %v1911 = vmul.f32 %v1895, %v1895
    %v1912 = vmul.f32 %v1896, %v1896
    %v1913 = vmul.f32 %v1897, %v1897
    %v1914 = vmul.f32 %v1898, %v1898
    %v1915 = vmul.f32 %v1899, %v1899
    %v1916 = vmul.f32 %v1900, %v1900
    %1917 = vadd.xlane.f32.xlu0 %v1901
    %v1918 = vpop.xlane.xlu0 %1917
    %1919 = vadd.xlane.f32.xlu0 %v1902
    %v1920 = vpop.xlane.xlu0 %1919
    %1921 = vadd.xlane.f32.xlu0 %v1903
    %v1922 = vpop.xlane.xlu0 %1921
    %1923 = vadd.xlane.f32.xlu0 %v1904
    %v1924 = vpop.xlane.xlu0 %1923
    %1925 = vadd.xlane.f32.xlu0 %v1905
    %v1926 = vpop.xlane.xlu0 %1925
    %1927 = vadd.xlane.f32.xlu0 %v1906
    %v1928 = vpop.xlane.xlu0 %1927
    %1929 = vadd.xlane.f32.xlu0 %v1907
    %v1930 = vpop.xlane.xlu0 %1929
    %1931 = vadd.xlane.f32.xlu0 %v1908
    %v1932 = vpop.xlane.xlu0 %1931
    %1933 = vadd.xlane.f32.xlu0 %v1909
    %v1934 = vpop.xlane.xlu0 %1933
    %1935 = vadd.xlane.f32.xlu0 %v1910
    %v1936 = vpop.xlane.xlu0 %1935
    %1937 = vadd.xlane.f32.xlu0 %v1911
    %v1938 = vpop.xlane.xlu0 %1937
    %1939 = vadd.xlane.f32.xlu0 %v1912
    %v1940 = vpop.xlane.xlu0 %1939
    %1941 = vadd.xlane.f32.xlu0 %v1913
    %v1942 = vpop.xlane.xlu0 %1941
    %1943 = vadd.xlane.f32.xlu0 %v1914
    %v1944 = vpop.xlane.xlu0 %1943
    %1945 = vadd.xlane.f32.xlu0 %v1915
    %v1946 = vpop.xlane.xlu0 %1945
    %1947 = vadd.xlane.f32.xlu0 %v1916
    %v1948 = vpop.xlane.xlu0 %1947
    %v1949 = vmul.f32 %v1918, 0.0078125
    %v1950 = vmul.f32 %v1920, 0.0078125
    %v1951 = vmul.f32 %v1922, 0.0078125
    %v1952 = vmul.f32 %v1924, 0.0078125
    %v1953 = vmul.f32 %v1926, 0.0078125
    %v1954 = vmul.f32 %v1928, 0.0078125
    %v1955 = vmul.f32 %v1930, 0.0078125
    %v1956 = vmul.f32 %v1932, 0.0078125
    %v1957 = vmul.f32 %v1934, 0.0078125
    %v1958 = vmul.f32 %v1936, 0.0078125
    %v1959 = vmul.f32 %v1938, 0.0078125
    %v1960 = vmul.f32 %v1940, 0.0078125
    %v1961 = vmul.f32 %v1942, 0.0078125
    %v1962 = vmul.f32 %v1944, 0.0078125
    %v1963 = vmul.f32 %v1946, 0.0078125
    %v1964 = vmul.f32 %v1948, 0.0078125
    %v1965 = vrsqrt.pop %v1949
    %v1966 = vrsqrt.pop %v1950
    %v1967 = vrsqrt.pop %v1951
    %v1968 = vrsqrt.pop %v1952
    %v1969 = vrsqrt.pop %v1953
    %v1970 = vrsqrt.pop %v1954
    %v1971 = vrsqrt.pop %v1955
    %v1972 = vrsqrt.pop %v1956
    %v1973 = vrsqrt.pop %v1957
    %v1974 = vrsqrt.pop %v1958
    %v1975 = vrsqrt.pop %v1959
    %v1976 = vrsqrt.pop %v1960
    %v1977 = vrsqrt.pop %v1961
    %v1978 = vrsqrt.pop %v1962
    %v1979 = vrsqrt.pop %v1963
    %v1980 = vrsqrt.pop %v1964
    %v1981 = vmin.f32 %v1965, 10000.0
    %v1982 = vmin.f32 %v1966, 10000.0
    %v1983 = vmin.f32 %v1967, 10000.0
    %v1984 = vmin.f32 %v1968, 10000.0
    %v1985 = vmin.f32 %v1969, 10000.0
    %v1986 = vmin.f32 %v1970, 10000.0
    %v1987 = vmin.f32 %v1971, 10000.0
    %v1988 = vmin.f32 %v1972, 10000.0
    %v1989 = vmin.f32 %v1973, 10000.0
    %v1990 = vmin.f32 %v1974, 10000.0
    %v1991 = vmin.f32 %v1975, 10000.0
    %v1992 = vmin.f32 %v1976, 10000.0
    %v1993 = vmin.f32 %v1977, 10000.0
    %v1994 = vmin.f32 %v1978, 10000.0
    %v1995 = vmin.f32 %v1979, 10000.0
    %v1996 = vmin.f32 %v1980, 10000.0
    %s1997 = sld [smem:[#allocation2]]
    %v1998 = vstv %s1997
    %v1999 = vmul.f32 %v1981, %v1998
    %v2000 = vmul.f32 %v1982, %v1998
    %v2001 = vmul.f32 %v1983, %v1998
    %v2002 = vmul.f32 %v1984, %v1998
    %v2003 = vmul.f32 %v1985, %v1998
    %v2004 = vmul.f32 %v1986, %v1998
    %v2005 = vmul.f32 %v1987, %v1998
    %v2006 = vmul.f32 %v1988, %v1998
    %v2007 = vmul.f32 %v1989, %v1998
    %v2008 = vmul.f32 %v1990, %v1998
    %v2009 = vmul.f32 %v1991, %v1998
    %v2010 = vmul.f32 %v1992, %v1998
    %v2011 = vmul.f32 %v1993, %v1998
    %v2012 = vmul.f32 %v1994, %v1998
    %v2013 = vmul.f32 %v1995, %v1998
    %v2014 = vmul.f32 %v1996, %v1998
    %v2015 = vmul.f32 %v1885, %v1999
    %v2016 = vmul.f32 %v1886, %v2000
    %v2017 = vmul.f32 %v1887, %v2001
    %v2018 = vmul.f32 %v1888, %v2002
    %v2019 = vmul.f32 %v1889, %v2003
    %v2020 = vmul.f32 %v1890, %v2004
    %v2021 = vmul.f32 %v1891, %v2005
    %v2022 = vmul.f32 %v1892, %v2006
    %v2023 = vmul.f32 %v1893, %v2007
    %v2024 = vmul.f32 %v1894, %v2008
    %v2025 = vmul.f32 %v1895, %v2009
    %v2026 = vmul.f32 %v1896, %v2010
    %v2027 = vmul.f32 %v1897, %v2011
    %v2028 = vmul.f32 %v1898, %v2012
    %v2029 = vmul.f32 %v1899, %v2013
    %v2030 = vmul.f32 %v1900, %v2014
    %v2031 = vpack.c.bf16 %v2016, %v2015
    %v2032 = vpack.c.bf16 %v2018, %v2017
    %v2033 = vpack.c.bf16 %v2020, %v2019
    %v2034 = vpack.c.bf16 %v2022, %v2021
    %v2035 = vpack.c.bf16 %v2024, %v2023
    %v2036 = vpack.c.bf16 %v2026, %v2025
    %v2037 = vpack.c.bf16 %v2028, %v2027
    %v2038 = vpack.c.bf16 %v2030, %v2029
    %v2047 = vunpack.c.l.b16 %v2031
    %v2048 = vunpack.c.h.b16 %v2031
    %v2049 = vunpack.c.l.b16 %v2032
    %v2050 = vunpack.c.h.b16 %v2032
    %v2051 = vunpack.c.l.b16 %v2033
    %v2052 = vunpack.c.h.b16 %v2033
    %v2053 = vunpack.c.l.b16 %v2034
    %v2054 = vunpack.c.h.b16 %v2034
    %v2055 = vunpack.c.l.b16 %v2035
    %v2056 = vunpack.c.h.b16 %v2035
    %v2057 = vunpack.c.l.b16 %v2036
    %v2058 = vunpack.c.h.b16 %v2036
    %v2059 = vunpack.c.l.b16 %v2037
    %v2060 = vunpack.c.h.b16 %v2037
    %v2061 = vunpack.c.l.b16 %v2038
    %v2062 = vunpack.c.h.b16 %v2038
    %v2063 = vpack.c.b16 %v2047, %v2047
    %v2064 = vpack.c.b16 %v2048, %v2048
    %v2065 = vpack.c.b16 %v2049, %v2049
    %v2066 = vpack.c.b16 %v2050, %v2050
    %v2067 = vpack.c.b16 %v2051, %v2051
    %v2068 = vpack.c.b16 %v2052, %v2052
    %v2069 = vpack.c.b16 %v2053, %v2053
    %v2070 = vpack.c.b16 %v2054, %v2054
    %v2071 = vpack.c.b16 %v2055, %v2055
    %v2072 = vpack.c.b16 %v2056, %v2056
    %v2073 = vpack.c.b16 %v2057, %v2057
    %v2074 = vpack.c.b16 %v2058, %v2058
    %v2075 = vpack.c.b16 %v2059, %v2059
    %v2076 = vpack.c.b16 %v2060, %v2060
    %v2077 = vpack.c.b16 %v2061, %v2061
    %v2078 = vpack.c.b16 %v2062, %v2062
    %2095 = vst [vmem:[#allocation12] sm:$0xf] %v2063
    %2096 = vst [vmem:[#allocation12 + $0x4] sm:$0xf] %v2064
    %2097 = vst [vmem:[#allocation12 + $0x8] sm:$0xf] %v2065
    %2098 = vst [vmem:[#allocation12 + $0xc] sm:$0xf] %v2066
    %2099 = vst [vmem:[#allocation12 + $0x10] sm:$0xf] %v2067
    %2100 = vst [vmem:[#allocation12 + $0x14] sm:$0xf] %v2068
    %2101 = vst [vmem:[#allocation12 + $0x18] sm:$0xf] %v2069
    %2102 = vst [vmem:[#allocation12 + $0x1c] sm:$0xf] %v2070
    %2103 = vst [vmem:[#allocation12 + $0x20] sm:$0xf] %v2071
    %2104 = vst [vmem:[#allocation12 + $0x24] sm:$0xf] %v2072
    %2105 = vst [vmem:[#allocation12 + $0x28] sm:$0xf] %v2073
    %2106 = vst [vmem:[#allocation12 + $0x2c] sm:$0xf] %v2074
    %2107 = vst [vmem:[#allocation12 + $0x30] sm:$0xf] %v2075
    %2108 = vst [vmem:[#allocation12 + $0x34] sm:$0xf] %v2076
    %2109 = vst [vmem:[#allocation12 + $0x38] sm:$0xf] %v2077
    %2110 = vst [vmem:[#allocation12 + $0x3c] sm:$0xf] %v2078
    // Predicated region
    $region70: #{tpu_custom_call.1} parent=1 // pred_check
      _
    $region71: #{tpu_custom_call.1} parent=1 // pred_check_branch
      %2112 = sbr.rel (0) target = $region73
    $region72: #{tpu_custom_call.1} parent=1 // pred_region
      %s2114 = ssub.s32 1024, 1024
      %2115 = vsyncadd [#allocation5], %s2114
      %s2116 = sshll.u32 [#allocation12], 4
      %s2117 = int_to_ptr.vmem [resolvable:$true] %s2116
      %2122 = dma.vmem_to_hbm [thread:$0]  %s2117, 1024, %s12, [#allocation5], 64, 64, 4
    $region73: #{tpu_custom_call.1} parent=1 // pred_fallthru
      _
    // Predicated region
    $region74: #{tpu_custom_call.1} parent=1 // pred_check
      _
    $region75: #{tpu_custom_call.1} parent=1 // pred_check_branch
      %2124 = sbr.rel (0) target = $region77
    $region76: #{tpu_custom_call.1} parent=1 // pred_region
      %2125 = dma.done [#allocation5], 1024
    $region77: #{tpu_custom_call.1} parent=1 // pred_fallthru
      _
    %2126 = vsyncpa [#allocation4], 1
    %2127 = vsyncpa [#allocation7], 1
    %2128 = vsyncpa [#allocation10], 1
    %2129 = vsyncpa [#allocation5], 1

</llo_original>
